<compile_context>
chip_gen: v5e
topology: v5e:2x2
jax: 0.10.0
libtpu: 0.0.40
codegen_flags: <defaults>
</compile_context>

<pallas_src>
import math
from functools import partial

import jax
import jax.numpy as jnp
from jax import lax
from jax.experimental import pallas as pl
from jax.experimental.pallas import tpu as pltpu

EPS = 1e-5  # torch.nn.InstanceNorm2d default


def _round_up(a, b):
    return (a + b - 1) // b * b


def _residual_block_kernel(xpad_ref, w1_ref, b1_ref, w2_ref, b2_ref, mask_ref,
                           out_ref, patches_ref, ypad_ref, *, H, W, Wp, K, C, S):
    Lo = H * Wp                     # flattened output length (with junk cols)
    Lp2 = ypad_ref.shape[1]
    inv_n = 1.0 / (H * W)

    mask = mask_ref[...]            # (1, Lo) valid-column mask (precomputed on host)
    b1 = b1_ref[...]                # (C, 1)
    b2 = b2_ref[...]

    # ---------------- conv1: stack K*K lane-shifted taps, one MXU matmul -----------
    for kh in range(K):
        for kw in range(K):
            t = kh * K + kw
            off = kh * Wp + kw
            patches_ref[t * C:(t + 1) * C, :] = xpad_ref[0, :, off:off + Lo]
    acc = jnp.dot(w1_ref[...], patches_ref[...].astype(jnp.bfloat16),
                  preferred_element_type=jnp.float32) + b1        # (C, Lo) f32

    # ---------------- instance norm 1 (one-pass stats) + ReLU ----------------------
    am = acc * mask
    mean = jnp.sum(am, axis=1, keepdims=True) * inv_n
    var = jnp.sum(am * acc, axis=1, keepdims=True) * inv_n - mean * mean
    y = jnp.maximum((acc - mean) * lax.rsqrt(var + EPS), 0.0) * mask

    # ---------------- re-pad y into scratch (lane-aligned stores) ------------------
    # Borders only are zeroed (both 128-aligned slabs); interior written once at the
    # 128-aligned offset S.  Whole buffer is covered every step -> megacore-safe.
    ypad_ref[:, 0:S] = jnp.zeros((C, S), jnp.float32)
    ypad_ref[:, S + Lo:Lp2] = jnp.zeros((C, Lp2 - S - Lo), jnp.float32)
    ypad_ref[:, S:S + Lo] = y

    # ---------------- conv2 (same single-matmul structure, reuse patch scratch) ----
    base = S - (Wp + 1)
    for kh in range(K):
        for kw in range(K):
            t = kh * K + kw
            off = base + kh * Wp + kw
            patches_ref[t * C:(t + 1) * C, :] = ypad_ref[:, off:off + Lo]
    acc2 = jnp.dot(w2_ref[...], patches_ref[...].astype(jnp.bfloat16),
                   preferred_element_type=jnp.float32) + b2

    # ---------------- instance norm 2 ----------------------------------------------
    am2 = acc2 * mask
    mean2 = jnp.sum(am2, axis=1, keepdims=True) * inv_n
    var2 = jnp.sum(am2 * acc2, axis=1, keepdims=True) * inv_n - mean2 * mean2
    z = (acc2 - mean2) * lax.rsqrt(var2 + EPS)

    # ---------------- residual add --------------------------------------------------
    # centre tap slice of the padded input is exactly the original x (flat layout).
    resid = xpad_ref[0, :, Wp + 1:Wp + 1 + Lo]
    out_ref[0, :, :] = resid + z


def residual_block(x, w1, b1, w2, b2):
    """x: (N, C, H, W) float32; w*: (Cout, Cin, K, K) torch layout; b*: (Cout,)."""
    N, C, H, W = x.shape
    Cout, Cin, K, _ = w1.shape
    assert Cout == C and Cin == C, "residual add requires in_channels == out_channels"

    # Pick padded row width Wp >= W+2 such that Lo = H*Wp is a multiple of 128.
    m = 128 // math.gcd(H, 128)
    Wp = _round_up(W + 2, m)
    Lo = H * Wp
    Lp1 = (H + 3) * Wp                      # padded flat input length (top 1 + bottom 2 rows)
    S = _round_up(Wp + 1, 128)              # 128-aligned interior offset of re-pad scratch
    Lp2 = S + Lo + S                        # re-pad scratch length (aligned borders)

    # pad: 1 top, 2 bottom, 1 left, (Wp - W - 1) right junk/pad -> flatten spatial.
    xpad = jnp.pad(x.astype(jnp.float32), ((0, 0), (0, 0), (1, 2), (1, Wp - W - 1)))
    xpad_flat = xpad.reshape(N, C, Lp1)

    # Pack weights to (Cout, K*K*Cin), column order (kh, kw, ci) matching the patch
    # row order, and cast to bf16 (single-pass MXU, f32 accumulation in-kernel).
    KKC = K * K * C
    w1k = jnp.transpose(w1, (0, 2, 3, 1)).reshape(C, KKC).astype(jnp.bfloat16)
    w2k = jnp.transpose(w2, (0, 2, 3, 1)).reshape(C, KKC).astype(jnp.bfloat16)
    b1k = b1.reshape(C, 1).astype(jnp.float32)
    b2k = b2.reshape(C, 1).astype(jnp.float32)

    # valid-column mask, hoisted out of the kernel body.
    mask = ((jnp.arange(Lo, dtype=jnp.int32) % Wp) < W).astype(jnp.float32).reshape(1, Lo)

    # TODO(synk): at production sizes (e.g. C=128, H=W>=64) add a spatial row-tiled
    # grid axis with a 1-row halo (or raise vmem_limit_bytes) so the blocks fit the
    # 64 MiB VMEM on v7x.
    out_flat = pl.pallas_call(
        partial(_residual_block_kernel, H=H, W=W, Wp=Wp, K=K, C=C, S=S),
        out_shape=jax.ShapeDtypeStruct((N, C, Lo), jnp.float32),
        grid_spec=pltpu.PrefetchScalarGridSpec(
            num_scalar_prefetch=0,
            grid=(N,),
            in_specs=[
                pl.BlockSpec((1, C, Lp1), lambda n: (n, 0, 0)),   # padded input
                pl.BlockSpec((C, KKC), lambda n: (0, 0)),         # packed w1 (bf16)
                pl.BlockSpec((C, 1), lambda n: (0, 0)),           # b1
                pl.BlockSpec((C, KKC), lambda n: (0, 0)),         # packed w2 (bf16)
                pl.BlockSpec((C, 1), lambda n: (0, 0)),           # b2
                pl.BlockSpec((1, Lo), lambda n: (0, 0)),          # valid-column mask
            ],
            out_specs=pl.BlockSpec((1, C, Lo), lambda n: (n, 0, 0)),
            scratch_shapes=[
                pltpu.VMEM((KKC, Lo), jnp.float32),               # stacked conv taps
                pltpu.VMEM((C, Lp2), jnp.float32),                # re-padded intermediate
            ],
        ),
        compiler_params=pltpu.CompilerParams(dimension_semantics=("parallel",)),
    )(xpad_flat, w1k, b1k, w2k, b2k, mask)

    # strip the junk columns per row -> NCHW
    return out_flat.reshape(N, C, H, Wp)[:, :, :, :W]


# -------------------- pure-JAX reference (for correctness check) --------------------
def _instance_norm(x):
    mean = jnp.mean(x, axis=(2, 3), keepdims=True)
    var = jnp.mean((x - mean) ** 2, axis=(2, 3), keepdims=True)
    return (x - mean) / jnp.sqrt(var + EPS)


def _reference(x, w1, b1, w2, b2, matmul_dtype=jnp.float32,
               precision=lax.Precision.HIGHEST):
    dn = ("NCHW", "OIHW", "NCHW")

    def conv(inp, w):
        return lax.conv_general_dilated(
            inp.astype(matmul_dtype), w.astype(matmul_dtype), (1, 1),
            [(1, 1), (1, 1)], dimension_numbers=dn,
            preferred_element_type=jnp.float32, precision=precision)

    y = conv(x, w1) + b1.reshape(1, -1, 1, 1)
    y = jnp.maximum(_instance_norm(y), 0.0)
    z = conv(y, w2) + b2.reshape(1, -1, 1, 1)
    return x + _instance_norm(z)


if __name__ == "__main__":
    N, C, H, W, K = 2, 4, 16, 16, 3   # in_channels == out_channels (residual add)
    key = jax.random.PRNGKey(0)
    k1, k2, k3, k4, k5 = jax.random.split(key, 5)

    x = jax.random.normal(k1, (N, C, H, W), jnp.float32)
    w1 = jax.random.normal(k2, (C, C, K, K), jnp.float32) * 0.2
    b1 = jax.random.normal(k3, (C,), jnp.float32) * 0.1
    w2 = jax.random.normal(k4, (C, C, K, K), jnp.float32) * 0.2
    b2 = jax.random.normal(k5, (C,), jnp.float32) * 0.1

    out = residual_block(x, w1, b1, w2, b2)
    jax.block_until_ready(out)
    assert out.shape == (N, C, H, W)

    # Precision-matched reference (bf16 conv operands, f32 accumulation — same as the
    # kernel's single-pass MXU) and a full-f32 reference for a looser sanity bound.
    ref_matched = _reference(x, w1, b1, w2, b2, matmul_dtype=jnp.bfloat16)
    ref_f32 = _reference(x, w1, b1, w2, b2)

    err_matched = float(jnp.max(jnp.abs(out - ref_matched)))
    err_f32 = float(jnp.max(jnp.abs(out - ref_f32)))
    assert err_matched < 5e-3, f"max abs error vs precision-matched ref {err_matched}"
    assert err_f32 < 5e-2, f"max abs error vs f32 ref {err_f32}"
    print("KERNEL_OK")
</pallas_src>

<mosaic_0001>
module attributes {stable_mosaic.version = 11 : i64} {
  func.func @_residual_block_kernel(%arg0: i32, %arg1: memref<1x4x456xf32, #tpu.memory_space<vmem>>, %arg2: memref<4x36xbf16, #tpu.memory_space<vmem>>, %arg3: memref<4x1xf32, #tpu.memory_space<vmem>>, %arg4: memref<4x36xbf16, #tpu.memory_space<vmem>>, %arg5: memref<4x1xf32, #tpu.memory_space<vmem>>, %arg6: memref<1x384xf32, #tpu.memory_space<vmem>>, %arg7: memref<1x4x384xf32, #tpu.memory_space<vmem>>, %arg8: memref<36x384xf32, #tpu.memory_space<vmem>>, %arg9: memref<4x640xf32, #tpu.memory_space<vmem>>) attributes {dimension_semantics = [#tpu.dimension_semantics<parallel>], iteration_bounds = array<i64: 2>, scalar_prefetch = 0 : i64, scratch_operands = 2 : i64, tpu.core_type = #tpu.core_type<tc>, window_params = [{transform_indices = @transform_0, window_bounds = array<i64: 1, 4, 456>}, {pipeline_mode = #tpu.pipeline_mode<synchronous>, transform_indices = @transform_1, window_bounds = array<i64: 4, 36>}, {pipeline_mode = #tpu.pipeline_mode<synchronous>, transform_indices = @transform_2, window_bounds = array<i64: 4, 1>}, {pipeline_mode = #tpu.pipeline_mode<synchronous>, transform_indices = @transform_3, window_bounds = array<i64: 4, 36>}, {pipeline_mode = #tpu.pipeline_mode<synchronous>, transform_indices = @transform_4, window_bounds = array<i64: 4, 1>}, {pipeline_mode = #tpu.pipeline_mode<synchronous>, transform_indices = @transform_5, window_bounds = array<i64: 1, 384>}, {transform_indices = @transform_6, window_bounds = array<i64: 1, 4, 384>}]} {
    %c0 = arith.constant 0 : index
    %c0_0 = arith.constant 0 : index
    %0 = vector.load %arg6[%c0, %c0_0] : memref<1x384xf32, #tpu.memory_space<vmem>>, vector<1x384xf32>
    %c0_1 = arith.constant 0 : index
    %c0_2 = arith.constant 0 : index
    %1 = vector.load %arg3[%c0_1, %c0_2] : memref<4x1xf32, #tpu.memory_space<vmem>>, vector<4x1xf32>
    %c0_3 = arith.constant 0 : index
    %c0_4 = arith.constant 0 : index
    %2 = vector.load %arg5[%c0_3, %c0_4] : memref<4x1xf32, #tpu.memory_space<vmem>>, vector<4x1xf32>
    %c0_5 = arith.constant 0 : index
    %c0_6 = arith.constant 0 : index
    %c0_7 = arith.constant 0 : index
    %3 = vector.load %arg1[%c0_5, %c0_6, %c0_7] : memref<1x4x456xf32, #tpu.memory_space<vmem>>, vector<1x4x384xf32>
    %4 = vector.shape_cast %3 : vector<1x4x384xf32> to vector<4x384xf32>
    %c0_8 = arith.constant 0 : index
    %c0_9 = arith.constant 0 : index
    %5 = vector.load %arg8[%c0_8, %c0_9] : memref<36x384xf32, #tpu.memory_space<vmem>>, vector<4x384xf32>
    tpu.vector_store %arg8[%c0_8, %c0_9], %4 {strides = array<i32>} : memref<36x384xf32, #tpu.memory_space<vmem>>, vector<4x384xf32>,
    %c0_10 = arith.constant 0 : index
    %c0_11 = arith.constant 0 : index
    %c1 = arith.constant 1 : index
    %6 = vector.load %arg1[%c0_10, %c0_11, %c1] : memref<1x4x456xf32, #tpu.memory_space<vmem>>, vector<1x4x384xf32>
    %7 = vector.shape_cast %6 : vector<1x4x384xf32> to vector<4x384xf32>
    %c4 = arith.constant 4 : index
    %c0_12 = arith.constant 0 : index
    %8 = vector.load %arg8[%c4, %c0_12] : memref<36x384xf32, #tpu.memory_space<vmem>>, vector<4x384xf32>
    tpu.vector_store %arg8[%c4, %c0_12], %7 {strides = array<i32>} : memref<36x384xf32, #tpu.memory_space<vmem>>, vector<4x384xf32>,
    %c0_13 = arith.constant 0 : index
    %c0_14 = arith.constant 0 : index
    %c2 = arith.constant 2 : index
    %9 = vector.load %arg1[%c0_13, %c0_14, %c2] : memref<1x4x456xf32, #tpu.memory_space<vmem>>, vector<1x4x384xf32>
    %10 = vector.shape_cast %9 : vector<1x4x384xf32> to vector<4x384xf32>
    %c8 = arith.constant 8 : index
    %c0_15 = arith.constant 0 : index
    %11 = vector.load %arg8[%c8, %c0_15] : memref<36x384xf32, #tpu.memory_space<vmem>>, vector<4x384xf32>
    tpu.vector_store %arg8[%c8, %c0_15], %10 {strides = array<i32>} : memref<36x384xf32, #tpu.memory_space<vmem>>, vector<4x384xf32>,
    %c0_16 = arith.constant 0 : index
    %c0_17 = arith.constant 0 : index
    %c24 = arith.constant 24 : index
    %12 = vector.load %arg1[%c0_16, %c0_17, %c24] : memref<1x4x456xf32, #tpu.memory_space<vmem>>, vector<1x4x384xf32>
    %13 = vector.shape_cast %12 : vector<1x4x384xf32> to vector<4x384xf32>
    %c12 = arith.constant 12 : index
    %c0_18 = arith.constant 0 : index
    %14 = vector.load %arg8[%c12, %c0_18] : memref<36x384xf32, #tpu.memory_space<vmem>>, vector<4x384xf32>
    tpu.vector_store %arg8[%c12, %c0_18], %13 {strides = array<i32>} : memref<36x384xf32, #tpu.memory_space<vmem>>, vector<4x384xf32>,
    %c0_19 = arith.constant 0 : index
    %c0_20 = arith.constant 0 : index
    %c25 = arith.constant 25 : index
    %15 = vector.load %arg1[%c0_19, %c0_20, %c25] : memref<1x4x456xf32, #tpu.memory_space<vmem>>, vector<1x4x384xf32>
    %16 = vector.shape_cast %15 : vector<1x4x384xf32> to vector<4x384xf32>
    %c16 = arith.constant 16 : index
    %c0_21 = arith.constant 0 : index
    %17 = vector.load %arg8[%c16, %c0_21] : memref<36x384xf32, #tpu.memory_space<vmem>>, vector<4x384xf32>
    tpu.vector_store %arg8[%c16, %c0_21], %16 {strides = array<i32>} : memref<36x384xf32, #tpu.memory_space<vmem>>, vector<4x384xf32>,
    %c0_22 = arith.constant 0 : index
    %c0_23 = arith.constant 0 : index
    %c26 = arith.constant 26 : index
    %18 = vector.load %arg1[%c0_22, %c0_23, %c26] : memref<1x4x456xf32, #tpu.memory_space<vmem>>, vector<1x4x384xf32>
    %19 = vector.shape_cast %18 : vector<1x4x384xf32> to vector<4x384xf32>
    %c20 = arith.constant 20 : index
    %c0_24 = arith.constant 0 : index
    %20 = vector.load %arg8[%c20, %c0_24] : memref<36x384xf32, #tpu.memory_space<vmem>>, vector<4x384xf32>
    tpu.vector_store %arg8[%c20, %c0_24], %19 {strides = array<i32>} : memref<36x384xf32, #tpu.memory_space<vmem>>, vector<4x384xf32>,
    %c0_25 = arith.constant 0 : index
    %c0_26 = arith.constant 0 : index
    %c48 = arith.constant 48 : index
    %21 = vector.load %arg1[%c0_25, %c0_26, %c48] : memref<1x4x456xf32, #tpu.memory_space<vmem>>, vector<1x4x384xf32>
    %22 = vector.shape_cast %21 : vector<1x4x384xf32> to vector<4x384xf32>
    %c24_27 = arith.constant 24 : index
    %c0_28 = arith.constant 0 : index
    %23 = vector.load %arg8[%c24_27, %c0_28] : memref<36x384xf32, #tpu.memory_space<vmem>>, vector<4x384xf32>
    tpu.vector_store %arg8[%c24_27, %c0_28], %22 {strides = array<i32>} : memref<36x384xf32, #tpu.memory_space<vmem>>, vector<4x384xf32>,
    %c0_29 = arith.constant 0 : index
    %c0_30 = arith.constant 0 : index
    %c49 = arith.constant 49 : index
    %24 = vector.load %arg1[%c0_29, %c0_30, %c49] : memref<1x4x456xf32, #tpu.memory_space<vmem>>, vector<1x4x384xf32>
    %25 = vector.shape_cast %24 : vector<1x4x384xf32> to vector<4x384xf32>
    %c28 = arith.constant 28 : index
    %c0_31 = arith.constant 0 : index
    %26 = vector.load %arg8[%c28, %c0_31] : memref<36x384xf32, #tpu.memory_space<vmem>>, vector<4x384xf32>
    tpu.vector_store %arg8[%c28, %c0_31], %25 {strides = array<i32>} : memref<36x384xf32, #tpu.memory_space<vmem>>, vector<4x384xf32>,
    %c0_32 = arith.constant 0 : index
    %c0_33 = arith.constant 0 : index
    %c50 = arith.constant 50 : index
    %27 = vector.load %arg1[%c0_32, %c0_33, %c50] : memref<1x4x456xf32, #tpu.memory_space<vmem>>, vector<1x4x384xf32>
    %28 = vector.shape_cast %27 : vector<1x4x384xf32> to vector<4x384xf32>
    %c32 = arith.constant 32 : index
    %c0_34 = arith.constant 0 : index
    %29 = vector.load %arg8[%c32, %c0_34] : memref<36x384xf32, #tpu.memory_space<vmem>>, vector<4x384xf32>
    tpu.vector_store %arg8[%c32, %c0_34], %28 {strides = array<i32>} : memref<36x384xf32, #tpu.memory_space<vmem>>, vector<4x384xf32>,
    %c0_35 = arith.constant 0 : index
    %c0_36 = arith.constant 0 : index
    %30 = vector.load %arg2[%c0_35, %c0_36] : memref<4x36xbf16, #tpu.memory_space<vmem>>, vector<4x36xbf16>
    %c0_37 = arith.constant 0 : index
    %c0_38 = arith.constant 0 : index
    %31 = vector.load %arg8[%c0_37, %c0_38] : memref<36x384xf32, #tpu.memory_space<vmem>>, vector<36x384xf32>
    %32 = arith.truncf %31 : vector<36x384xf32> to vector<36x384xbf16>
    %cst = arith.constant dense<0.000000e+00> : vector<4x384xf32>
    %33 = tpu.matmul %30, %32, %cst {dimension_numbers = #tpu.dot_dimension_numbers<[1], [0], [0], [1], [0, 0, 1, 1], [], []>} : vector<4x36xbf16>, vector<36x384xbf16>, vector<4x384xf32> -> vector<4x384xf32>
    %34 = vector.broadcast %1 : vector<4x1xf32> to vector<4x384xf32>
    %35 = arith.addf %33, %34 : vector<4x384xf32>
    %36 = vector.broadcast %0 : vector<1x384xf32> to vector<4x384xf32>
    %37 = arith.mulf %35, %36 : vector<4x384xf32>
    %cst_39 = arith.constant dense<0.000000e+00> : vector<4xf32>
    %38 = vector.multi_reduction <add>, %37, %cst_39 [1] : vector<4x384xf32> to vector<4xf32>
    %39 = vector.shape_cast %38 : vector<4xf32> to vector<4x1xf32>
    %cst_40 = arith.constant 3.906250e-03 : f32
    %40 = vector.broadcast %cst_40 : f32 to vector<4x1xf32>
    %41 = arith.mulf %39, %40 : vector<4x1xf32>
    %42 = arith.mulf %37, %35 : vector<4x384xf32>
    %cst_41 = arith.constant dense<0.000000e+00> : vector<4xf32>
    %43 = vector.multi_reduction <add>, %42, %cst_41 [1] : vector<4x384xf32> to vector<4xf32>
    %44 = vector.shape_cast %43 : vector<4xf32> to vector<4x1xf32>
    %cst_42 = arith.constant 3.906250e-03 : f32
    %45 = vector.broadcast %cst_42 : f32 to vector<4x1xf32>
    %46 = arith.mulf %44, %45 : vector<4x1xf32>
    %47 = arith.mulf %41, %41 : vector<4x1xf32>
    %48 = arith.subf %46, %47 : vector<4x1xf32>
    %49 = vector.broadcast %41 : vector<4x1xf32> to vector<4x384xf32>
    %50 = arith.subf %35, %49 : vector<4x384xf32>
    %cst_43 = arith.constant 9.99999974E-6 : f32
    %51 = vector.broadcast %cst_43 : f32 to vector<4x1xf32>
    %52 = arith.addf %48, %51 : vector<4x1xf32>
    %53 = math.rsqrt %52 : vector<4x1xf32>
    %54 = vector.broadcast %53 : vector<4x1xf32> to vector<4x384xf32>
    %55 = arith.mulf %50, %54 : vector<4x384xf32>
    %cst_44 = arith.constant 0.000000e+00 : f32
    %56 = vector.broadcast %cst_44 : f32 to vector<4x384xf32>
    %57 = arith.maximumf %55, %56 : vector<4x384xf32>
    %58 = vector.broadcast %0 : vector<1x384xf32> to vector<4x384xf32>
    %59 = arith.mulf %57, %58 : vector<4x384xf32>
    %cst_45 = arith.constant 0.000000e+00 : f32
    %60 = vector.broadcast %cst_45 : f32 to vector<4x128xf32>
    %c0_46 = arith.constant 0 : index
    %c0_47 = arith.constant 0 : index
    %61 = vector.load %arg9[%c0_46, %c0_47] : memref<4x640xf32, #tpu.memory_space<vmem>>, vector<4x128xf32>
    tpu.vector_store %arg9[%c0_46, %c0_47], %60 {strides = array<i32>} : memref<4x640xf32, #tpu.memory_space<vmem>>, vector<4x128xf32>,
    %cst_48 = arith.constant 0.000000e+00 : f32
    %62 = vector.broadcast %cst_48 : f32 to vector<4x128xf32>
    %c0_49 = arith.constant 0 : index
    %c512 = arith.constant 512 : index
    %63 = vector.load %arg9[%c0_49, %c512] : memref<4x640xf32, #tpu.memory_space<vmem>>, vector<4x128xf32>
    tpu.vector_store %arg9[%c0_49, %c512], %62 {strides = array<i32>} : memref<4x640xf32, #tpu.memory_space<vmem>>, vector<4x128xf32>,
    %c0_50 = arith.constant 0 : index
    %c128 = arith.constant 128 : index
    %64 = vector.load %arg9[%c0_50, %c128] : memref<4x640xf32, #tpu.memory_space<vmem>>, vector<4x384xf32>
    tpu.vector_store %arg9[%c0_50, %c128], %59 {strides = array<i32>} : memref<4x640xf32, #tpu.memory_space<vmem>>, vector<4x384xf32>,
    %c0_51 = arith.constant 0 : index
    %c103 = arith.constant 103 : index
    %65 = vector.load %arg9[%c0_51, %c103] : memref<4x640xf32, #tpu.memory_space<vmem>>, vector<4x384xf32>
    %c0_52 = arith.constant 0 : index
    %c0_53 = arith.constant 0 : index
    %66 = vector.load %arg8[%c0_52, %c0_53] : memref<36x384xf32, #tpu.memory_space<vmem>>, vector<4x384xf32>
    tpu.vector_store %arg8[%c0_52, %c0_53], %65 {strides = array<i32>} : memref<36x384xf32, #tpu.memory_space<vmem>>, vector<4x384xf32>,
    %c0_54 = arith.constant 0 : index
    %c104 = arith.constant 104 : index
    %67 = vector.load %arg9[%c0_54, %c104] : memref<4x640xf32, #tpu.memory_space<vmem>>, vector<4x384xf32>
    %c4_55 = arith.constant 4 : index
    %c0_56 = arith.constant 0 : index
    %68 = vector.load %arg8[%c4_55, %c0_56] : memref<36x384xf32, #tpu.memory_space<vmem>>, vector<4x384xf32>
    tpu.vector_store %arg8[%c4_55, %c0_56], %67 {strides = array<i32>} : memref<36x384xf32, #tpu.memory_space<vmem>>, vector<4x384xf32>,
    %c0_57 = arith.constant 0 : index
    %c105 = arith.constant 105 : index
    %69 = vector.load %arg9[%c0_57, %c105] : memref<4x640xf32, #tpu.memory_space<vmem>>, vector<4x384xf32>
    %c8_58 = arith.constant 8 : index
    %c0_59 = arith.constant 0 : index
    %70 = vector.load %arg8[%c8_58, %c0_59] : memref<36x384xf32, #tpu.memory_space<vmem>>, vector<4x384xf32>
    tpu.vector_store %arg8[%c8_58, %c0_59], %69 {strides = array<i32>} : memref<36x384xf32, #tpu.memory_space<vmem>>, vector<4x384xf32>,
    %c0_60 = arith.constant 0 : index
    %c127 = arith.constant 127 : index
    %71 = vector.load %arg9[%c0_60, %c127] : memref<4x640xf32, #tpu.memory_space<vmem>>, vector<4x384xf32>
    %c12_61 = arith.constant 12 : index
    %c0_62 = arith.constant 0 : index
    %72 = vector.load %arg8[%c12_61, %c0_62] : memref<36x384xf32, #tpu.memory_space<vmem>>, vector<4x384xf32>
    tpu.vector_store %arg8[%c12_61, %c0_62], %71 {strides = array<i32>} : memref<36x384xf32, #tpu.memory_space<vmem>>, vector<4x384xf32>,
    %c0_63 = arith.constant 0 : index
    %c128_64 = arith.constant 128 : index
    %73 = vector.load %arg9[%c0_63, %c128_64] : memref<4x640xf32, #tpu.memory_space<vmem>>, vector<4x384xf32>
    %c16_65 = arith.constant 16 : index
    %c0_66 = arith.constant 0 : index
    %74 = vector.load %arg8[%c16_65, %c0_66] : memref<36x384xf32, #tpu.memory_space<vmem>>, vector<4x384xf32>
    tpu.vector_store %arg8[%c16_65, %c0_66], %73 {strides = array<i32>} : memref<36x384xf32, #tpu.memory_space<vmem>>, vector<4x384xf32>,
    %c0_67 = arith.constant 0 : index
    %c129 = arith.constant 129 : index
    %75 = vector.load %arg9[%c0_67, %c129] : memref<4x640xf32, #tpu.memory_space<vmem>>, vector<4x384xf32>
    %c20_68 = arith.constant 20 : index
    %c0_69 = arith.constant 0 : index
    %76 = vector.load %arg8[%c20_68, %c0_69] : memref<36x384xf32, #tpu.memory_space<vmem>>, vector<4x384xf32>
    tpu.vector_store %arg8[%c20_68, %c0_69], %75 {strides = array<i32>} : memref<36x384xf32, #tpu.memory_space<vmem>>, vector<4x384xf32>,
    %c0_70 = arith.constant 0 : index
    %c151 = arith.constant 151 : index
    %77 = vector.load %arg9[%c0_70, %c151] : memref<4x640xf32, #tpu.memory_space<vmem>>, vector<4x384xf32>
    %c24_71 = arith.constant 24 : index
    %c0_72 = arith.constant 0 : index
    %78 = vector.load %arg8[%c24_71, %c0_72] : memref<36x384xf32, #tpu.memory_space<vmem>>, vector<4x384xf32>
    tpu.vector_store %arg8[%c24_71, %c0_72], %77 {strides = array<i32>} : memref<36x384xf32, #tpu.memory_space<vmem>>, vector<4x384xf32>,
    %c0_73 = arith.constant 0 : index
    %c152 = arith.constant 152 : index
    %79 = vector.load %arg9[%c0_73, %c152] : memref<4x640xf32, #tpu.memory_space<vmem>>, vector<4x384xf32>
    %c28_74 = arith.constant 28 : index
    %c0_75 = arith.constant 0 : index
    %80 = vector.load %arg8[%c28_74, %c0_75] : memref<36x384xf32, #tpu.memory_space<vmem>>, vector<4x384xf32>
    tpu.vector_store %arg8[%c28_74, %c0_75], %79 {strides = array<i32>} : memref<36x384xf32, #tpu.memory_space<vmem>>, vector<4x384xf32>,
    %c0_76 = arith.constant 0 : index
    %c153 = arith.constant 153 : index
    %81 = vector.load %arg9[%c0_76, %c153] : memref<4x640xf32, #tpu.memory_space<vmem>>, vector<4x384xf32>
    %c32_77 = arith.constant 32 : index
    %c0_78 = arith.constant 0 : index
    %82 = vector.load %arg8[%c32_77, %c0_78] : memref<36x384xf32, #tpu.memory_space<vmem>>, vector<4x384xf32>
    tpu.vector_store %arg8[%c32_77, %c0_78], %81 {strides = array<i32>} : memref<36x384xf32, #tpu.memory_space<vmem>>, vector<4x384xf32>,
    %c0_79 = arith.constant 0 : index
    %c0_80 = arith.constant 0 : index
    %83 = vector.load %arg4[%c0_79, %c0_80] : memref<4x36xbf16, #tpu.memory_space<vmem>>, vector<4x36xbf16>
    %c0_81 = arith.constant 0 : index
    %c0_82 = arith.constant 0 : index
    %84 = vector.load %arg8[%c0_81, %c0_82] : memref<36x384xf32, #tpu.memory_space<vmem>>, vector<36x384xf32>
    %85 = arith.truncf %84 : vector<36x384xf32> to vector<36x384xbf16>
    %cst_83 = arith.constant dense<0.000000e+00> : vector<4x384xf32>
    %86 = tpu.matmul %83, %85, %cst_83 {dimension_numbers = #tpu.dot_dimension_numbers<[1], [0], [0], [1], [0, 0, 1, 1], [], []>} : vector<4x36xbf16>, vector<36x384xbf16>, vector<4x384xf32> -> vector<4x384xf32>
    %87 = vector.broadcast %2 : vector<4x1xf32> to vector<4x384xf32>
    %88 = arith.addf %86, %87 : vector<4x384xf32>
    %89 = vector.broadcast %0 : vector<1x384xf32> to vector<4x384xf32>
    %90 = arith.mulf %88, %89 : vector<4x384xf32>
    %cst_84 = arith.constant dense<0.000000e+00> : vector<4xf32>
    %91 = vector.multi_reduction <add>, %90, %cst_84 [1] : vector<4x384xf32> to vector<4xf32>
    %92 = vector.shape_cast %91 : vector<4xf32> to vector<4x1xf32>
    %cst_85 = arith.constant 3.906250e-03 : f32
    %93 = vector.broadcast %cst_85 : f32 to vector<4x1xf32>
    %94 = arith.mulf %92, %93 : vector<4x1xf32>
    %95 = arith.mulf %90, %88 : vector<4x384xf32>
    %cst_86 = arith.constant dense<0.000000e+00> : vector<4xf32>
    %96 = vector.multi_reduction <add>, %95, %cst_86 [1] : vector<4x384xf32> to vector<4xf32>
    %97 = vector.shape_cast %96 : vector<4xf32> to vector<4x1xf32>
    %cst_87 = arith.constant 3.906250e-03 : f32
    %98 = vector.broadcast %cst_87 : f32 to vector<4x1xf32>
    %99 = arith.mulf %97, %98 : vector<4x1xf32>
    %100 = arith.mulf %94, %94 : vector<4x1xf32>
    %101 = arith.subf %99, %100 : vector<4x1xf32>
    %102 = vector.broadcast %94 : vector<4x1xf32> to vector<4x384xf32>
    %103 = arith.subf %88, %102 : vector<4x384xf32>
    %cst_88 = arith.constant 9.99999974E-6 : f32
    %104 = vector.broadcast %cst_88 : f32 to vector<4x1xf32>
    %105 = arith.addf %101, %104 : vector<4x1xf32>
    %106 = math.rsqrt %105 : vector<4x1xf32>
    %107 = vector.broadcast %106 : vector<4x1xf32> to vector<4x384xf32>
    %108 = arith.mulf %103, %107 : vector<4x384xf32>
    %c0_89 = arith.constant 0 : index
    %c0_90 = arith.constant 0 : index
    %c25_91 = arith.constant 25 : index
    %109 = vector.load %arg1[%c0_89, %c0_90, %c25_91] : memref<1x4x456xf32, #tpu.memory_space<vmem>>, vector<1x4x384xf32>
    %110 = vector.shape_cast %109 : vector<1x4x384xf32> to vector<4x384xf32>
    %111 = arith.addf %110, %108 : vector<4x384xf32>
    %c0_92 = arith.constant 0 : index
    %c0_93 = arith.constant 0 : index
    %c0_94 = arith.constant 0 : index
    %112 = vector.load %arg7[%c0_92, %c0_93, %c0_94] : memref<1x4x384xf32, #tpu.memory_space<vmem>>, vector<1x4x384xf32>
    %113 = vector.shape_cast %112 : vector<1x4x384xf32> to vector<4x384xf32>
    %114 = vector.shape_cast %111 : vector<4x384xf32> to vector<1x4x384xf32>
    tpu.vector_store %arg7[%c0_92, %c0_93, %c0_94], %114 {strides = array<i32>} : memref<1x4x384xf32, #tpu.memory_space<vmem>>, vector<1x4x384xf32>,
    return
  }
  func.func @transform_0(%arg0: i32) -> (i32, i32, i32) {
    %c0_i32 = arith.constant 0 : i32
    %c0_i32_0 = arith.constant 0 : i32
    %c0_i32_1 = arith.constant 0 : i32
    return %arg0, %c0_i32, %c0_i32_0 : i32, i32, i32
  }
  func.func @transform_1(%arg0: i32) -> (i32, i32) {
    %c0_i32 = arith.constant 0 : i32
    %c0_i32_0 = arith.constant 0 : i32
    %c0_i32_1 = arith.constant 0 : i32
    return %c0_i32, %c0_i32_0 : i32, i32
  }
  func.func @transform_2(%arg0: i32) -> (i32, i32) {
    %c0_i32 = arith.constant 0 : i32
    %c0_i32_0 = arith.constant 0 : i32
    %c0_i32_1 = arith.constant 0 : i32
    return %c0_i32, %c0_i32_0 : i32, i32
  }
  func.func @transform_3(%arg0: i32) -> (i32, i32) {
    %c0_i32 = arith.constant 0 : i32
    %c0_i32_0 = arith.constant 0 : i32
    %c0_i32_1 = arith.constant 0 : i32
    return %c0_i32, %c0_i32_0 : i32, i32
  }
  func.func @transform_4(%arg0: i32) -> (i32, i32) {
    %c0_i32 = arith.constant 0 : i32
    %c0_i32_0 = arith.constant 0 : i32
    %c0_i32_1 = arith.constant 0 : i32
    return %c0_i32, %c0_i32_0 : i32, i32
  }
  func.func @transform_5(%arg0: i32) -> (i32, i32) {
    %c0_i32 = arith.constant 0 : i32
    %c0_i32_0 = arith.constant 0 : i32
    %c0_i32_1 = arith.constant 0 : i32
    return %c0_i32, %c0_i32_0 : i32, i32
  }
  func.func @transform_6(%arg0: i32) -> (i32, i32, i32) {
    %c0_i32 = arith.constant 0 : i32
    %c0_i32_0 = arith.constant 0 : i32
    %c0_i32_1 = arith.constant 0 : i32
    return %arg0, %c0_i32, %c0_i32_0 : i32, i32, i32
  }
}

</mosaic_0001>

<llo_original>
// kernel: tpu_custom_call.1
$region0: #{tpu_custom_call.1}
  #allocation0 [shape = 'u32[]', space=smem, size = 0x4, offset = 0x4, fixed_abs, tag = 'smem constant byte address 0x4 - core index']
  #allocation1 [shape = 'u32[72,128]{1,0:T(1,128)}', space=vmem, size = 0x9000, scoped, tag = 'internal scratch']
  #allocation2 [shape = 'f32[36,384]{1,0:T(8,128)}', space=vmem, size = 0xf000, scoped, tag = 'scratch operand']
  #allocation3 [shape = 'f32[4,640]{1,0:T(4,128)}', space=vmem, size = 0x2800, scoped, tag = 'scratch operand']
  %s0 = inlined_call_operand.hbm [shape: f32[2,4,456], index: 0, kind: input, shape index: {}]
  %s1 = inlined_call_operand.vmem [shape: bf16[4,36], index: 1, kind: input, shape index: {}]
  %s2 = inlined_call_operand.vmem [shape: f32[4,1], index: 2, kind: input, shape index: {}]
  %s3 = inlined_call_operand.vmem [shape: bf16[4,36], index: 3, kind: input, shape index: {}]
  %s4 = inlined_call_operand.vmem [shape: f32[4,1], index: 4, kind: input, shape index: {}]
  %s5 = inlined_call_operand.vmem [shape: f32[1,384], index: 5, kind: input, shape index: {}]
  %s6 = inlined_call_operand.hbm [shape: f32[2,4,384], index: 6, kind: output, shape index: {}]
  %s7 = sld [smem:[#allocation0]]
  $region61: #{tpu_custom_call.1} parent=0
    _
  %s9 = ssub.s32 1, %s7
  %s10 = scalar_select 0, %s9, %s7
  $region1: #{tpu_custom_call.1} parent=0
    #allocation4 [shape = 'u8[16384]{0}', space=vmem, size = 0x4000, scoped, tag = 'input window, operand 0']
    #allocation5 [shape = 's32[2]{0}', space=sflag, size = 0x8, scoped, tag = 'scoped memory for tpu_custom_call.1']
    #allocation6 [shape = 's32[2]{0}', space=sflag, size = 0x8, scoped, tag = 'scoped memory for tpu_custom_call.1']
    #allocation7 [shape = 'u8[12288]{0}', space=vmem, size = 0x3000, scoped, tag = 'output window, operand 0']
    %11 = vsyncpa [#allocation5], 0
    %s12 = scalar_lea.sflag [#allocation5], 1
    %13 = vsyncpa %s12, 0
    %14 = vsyncpa [#allocation6], 0
    %s15 = scalar_lea.sflag [#allocation6], 1
    %16 = vsyncpa %s15, 0
    loop: start=0, step=1, limit=4
    $region2: #{tpu_custom_call.1} parent=1 // loop_pre_header
      _
    $region3: #{tpu_custom_call.1} parent=1 // loop_header
      %s18 = sphi 0, %s22
      %p19 = scmp.ge.s32.totalorder %s18, 4
      %s28 = sphi 0, %s30
      %s31 = sphi 0, %s28
      %s32 = sphi 0, %s31
      %s48 = sphi 0, %s32
      %s52 = sphi 0, %s52
      %s54 = sphi 0, %s52
      %s55 = sphi 0, %s54
      %s69 = sphi 0, %s55
      %s73 = sphi 0, %s73
      %s75 = sphi 0, %s73
      %s76 = sphi 0, %s75
      %s90 = sphi 0, %s76
      %s94 = sphi 0, %s94
      %s96 = sphi 0, %s94
      %s97 = sphi 0, %s96
      %s111 = sphi 0, %s97
      %s115 = sphi 0, %s115
      %s117 = sphi 0, %s115
      %s118 = sphi 0, %s117
      %s132 = sphi 0, %s118
      %s136 = sphi 0, %s136
      %s138 = sphi 0, %s136
      %s139 = sphi 0, %s138
      %s153 = sphi 0, %s139
      %s159 = sphi 0, %s161
      %s162 = sphi 0, %s159
      %s163 = sphi 0, %s162
      %s179 = sphi 0, %s163
    $region4: #{tpu_custom_call.1} parent=1 // loop_header_branch
      %21 = sbr.rel (%p19) target = $region8
    $region5: #{tpu_custom_call.1} parent=1 // loop_body
      %s23 = ssub.s32 %s18, 1
      %s24 = ssub.s32 %s18, 2
      %s25 = sadd.s32 %s18, 1
      %s26 = ssub.s32 %s18, %s25
      %p27 = scmp.eq.s32.totalorder %s26, 0
      %s29 = sadd.s32 %s28, 1
      %s30 = scalar_select %p27, %s28, %s29
      %p33 = pneg %p27
      %p34 = scmp.eq.s32.totalorder %s18, 1
      %p35 = por %p33, %p34
      %p36 = scmp.ne.s32.totalorder %s28, %s31
      %p37 = scmp.eq.s32.totalorder %s18, 0
      %p38 = por %p36, %p37
      %p39 = scmp.ne.s32.totalorder %s28, %s31
      %p40 = scmp.eq.s32.totalorder %s23, 1
      %p41 = por %p39, %p40
      %p42 = scmp.ne.s32.totalorder %s31, %s32
      %p43 = scmp.eq.s32.totalorder %s23, 0
      %p44 = por %p42, %p43
      %p45 = scmp.ne.s32.totalorder %s31, %s32
      %p46 = scmp.eq.s32.totalorder %s24, 1
      %p47 = por %p45, %p46
      %p49 = scmp.ne.s32.totalorder %s32, %s48
      %p50 = scmp.eq.s32.totalorder %s24, 0
      %p51 = por %p49, %p50
      %s53 = sadd.s32 %s52, 1
      %p56 = scmp.eq.s32.totalorder %s18, 1
      %p57 = scmp.ne.s32.totalorder %s52, %s54
      %p58 = scmp.eq.s32.totalorder %s18, 0
      %p59 = por %p57, %p58
      %p60 = scmp.ne.s32.totalorder %s52, %s54
      %p61 = scmp.eq.s32.totalorder %s23, 1
      %p62 = por %p60, %p61
      %p63 = scmp.ne.s32.totalorder %s54, %s55
      %p64 = scmp.eq.s32.totalorder %s23, 0
      %p65 = por %p63, %p64
      %p66 = scmp.ne.s32.totalorder %s54, %s55
      %p67 = scmp.eq.s32.totalorder %s24, 1
      %p68 = por %p66, %p67
      %p70 = scmp.ne.s32.totalorder %s55, %s69
      %p71 = scmp.eq.s32.totalorder %s24, 0
      %p72 = por %p70, %p71
      %s74 = sadd.s32 %s73, 1
      %p77 = scmp.eq.s32.totalorder %s18, 1
      %p78 = scmp.ne.s32.totalorder %s73, %s75
      %p79 = scmp.eq.s32.totalorder %s18, 0
      %p80 = por %p78, %p79
      %p81 = scmp.ne.s32.totalorder %s73, %s75
      %p82 = scmp.eq.s32.totalorder %s23, 1
      %p83 = por %p81, %p82
      %p84 = scmp.ne.s32.totalorder %s75, %s76
      %p85 = scmp.eq.s32.totalorder %s23, 0
      %p86 = por %p84, %p85
      %p87 = scmp.ne.s32.totalorder %s75, %s76
      %p88 = scmp.eq.s32.totalorder %s24, 1
      %p89 = por %p87, %p88
      %p91 = scmp.ne.s32.totalorder %s76, %s90
      %p92 = scmp.eq.s32.totalorder %s24, 0
      %p93 = por %p91, %p92
      %s95 = sadd.s32 %s94, 1
      %p98 = scmp.eq.s32.totalorder %s18, 1
      %p99 = scmp.ne.s32.totalorder %s94, %s96
      %p100 = scmp.eq.s32.totalorder %s18, 0
      %p101 = por %p99, %p100
      %p102 = scmp.ne.s32.totalorder %s94, %s96
      %p103 = scmp.eq.s32.totalorder %s23, 1
      %p104 = por %p102, %p103
      %p105 = scmp.ne.s32.totalorder %s96, %s97
      %p106 = scmp.eq.s32.totalorder %s23, 0
      %p107 = por %p105, %p106
      %p108 = scmp.ne.s32.totalorder %s96, %s97
      %p109 = scmp.eq.s32.totalorder %s24, 1
      %p110 = por %p108, %p109
      %p112 = scmp.ne.s32.totalorder %s97, %s111
      %p113 = scmp.eq.s32.totalorder %s24, 0
      %p114 = por %p112, %p113
      %s116 = sadd.s32 %s115, 1
      %p119 = scmp.eq.s32.totalorder %s18, 1
      %p120 = scmp.ne.s32.totalorder %s115, %s117
      %p121 = scmp.eq.s32.totalorder %s18, 0
      %p122 = por %p120, %p121
      %p123 = scmp.ne.s32.totalorder %s115, %s117
      %p124 = scmp.eq.s32.totalorder %s23, 1
      %p125 = por %p123, %p124
      %p126 = scmp.ne.s32.totalorder %s117, %s118
      %p127 = scmp.eq.s32.totalorder %s23, 0
      %p128 = por %p126, %p127
      %p129 = scmp.ne.s32.totalorder %s117, %s118
      %p130 = scmp.eq.s32.totalorder %s24, 1
      %p131 = por %p129, %p130
      %p133 = scmp.ne.s32.totalorder %s118, %s132
      %p134 = scmp.eq.s32.totalorder %s24, 0
      %p135 = por %p133, %p134
      %s137 = sadd.s32 %s136, 1
      %p140 = scmp.eq.s32.totalorder %s18, 1
      %p141 = scmp.ne.s32.totalorder %s136, %s138
      %p142 = scmp.eq.s32.totalorder %s18, 0
      %p143 = por %p141, %p142
      %p144 = scmp.ne.s32.totalorder %s136, %s138
      %p145 = scmp.eq.s32.totalorder %s23, 1
      %p146 = por %p144, %p145
      %p147 = scmp.ne.s32.totalorder %s138, %s139
      %p148 = scmp.eq.s32.totalorder %s23, 0
      %p149 = por %p147, %p148
      %p150 = scmp.ne.s32.totalorder %s138, %s139
      %p151 = scmp.eq.s32.totalorder %s24, 1
      %p152 = por %p150, %p151
      %p154 = scmp.ne.s32.totalorder %s139, %s153
      %p155 = scmp.eq.s32.totalorder %s24, 0
      %p156 = por %p154, %p155
      %s157 = ssub.s32 %s18, %s25
      %p158 = scmp.eq.s32.totalorder %s157, 0
      %s160 = sadd.s32 %s159, 1
      %s161 = scalar_select %p158, %s159, %s160
      %p164 = pneg %p158
      %p165 = scmp.eq.s32.totalorder %s18, 1
      %p166 = por %p164, %p165
      %p167 = scmp.ne.s32.totalorder %s159, %s162
      %p168 = scmp.eq.s32.totalorder %s18, 0
      %p169 = por %p167, %p168
      %p170 = scmp.ne.s32.totalorder %s159, %s162
      %p171 = scmp.eq.s32.totalorder %s23, 1
      %p172 = por %p170, %p171
      %p173 = scmp.ne.s32.totalorder %s162, %s163
      %p174 = scmp.eq.s32.totalorder %s23, 0
      %p175 = por %p173, %p174
      %p176 = scmp.ne.s32.totalorder %s162, %s163
      %p177 = scmp.eq.s32.totalorder %s24, 1
      %p178 = por %p176, %p177
      %p180 = scmp.ne.s32.totalorder %s163, %s179
      %p181 = scmp.eq.s32.totalorder %s24, 0
      %p182 = por %p180, %p181
      %p183 = scmp.le.s32.totalorder 1, %s18
      %p184 = scmp.lt.s32.totalorder %s18, 3
      %p185 = pnand %p183, %p184
      %p186 = pneg %p185
      // Predicated region
      $region9: #{tpu_custom_call.1} parent=5 // pred_check
        _
      $region10: #{tpu_custom_call.1} parent=5 // pred_check_branch
        %188 = sbr.rel (%p185) target = $region12
      $region11: #{tpu_custom_call.1} parent=5 // pred_region
        %s189 = ssub.s32 %s18, 1
        // Predicated region
        $region13: #{tpu_custom_call.1} parent=11 // pred_check
          %p190 = pneg %p65
        $region14: #{tpu_custom_call.1} parent=11 // pred_check_branch
          %192 = sbr.rel (%p190) target = $region16
        $region15: #{tpu_custom_call.1} parent=11 // pred_region
          _
        $region16: #{tpu_custom_call.1} parent=11 // pred_fallthru
          _
        // Predicated region
        $region17: #{tpu_custom_call.1} parent=11 // pred_check
          %p193 = pneg %p86
        $region18: #{tpu_custom_call.1} parent=11 // pred_check_branch
          %195 = sbr.rel (%p193) target = $region20
        $region19: #{tpu_custom_call.1} parent=11 // pred_region
          _
        $region20: #{tpu_custom_call.1} parent=11 // pred_fallthru
          _
        // Predicated region
        $region21: #{tpu_custom_call.1} parent=11 // pred_check
          %p196 = pneg %p107
        $region22: #{tpu_custom_call.1} parent=11 // pred_check_branch
          %198 = sbr.rel (%p196) target = $region24
        $region23: #{tpu_custom_call.1} parent=11 // pred_region
          _
        $region24: #{tpu_custom_call.1} parent=11 // pred_fallthru
          _
        // Predicated region
        $region25: #{tpu_custom_call.1} parent=11 // pred_check
          %p199 = pneg %p128
        $region26: #{tpu_custom_call.1} parent=11 // pred_check_branch
          %201 = sbr.rel (%p199) target = $region28
        $region27: #{tpu_custom_call.1} parent=11 // pred_region
          _
        $region28: #{tpu_custom_call.1} parent=11 // pred_fallthru
          _
        // Predicated region
        $region29: #{tpu_custom_call.1} parent=11 // pred_check
          %p202 = pneg %p149
        $region30: #{tpu_custom_call.1} parent=11 // pred_check_branch
          %204 = sbr.rel (%p202) target = $region32
        $region31: #{tpu_custom_call.1} parent=11 // pred_region
          _
        $region32: #{tpu_custom_call.1} parent=11 // pred_fallthru
          _
      $region12: #{tpu_custom_call.1} parent=5 // pred_fallthru
        _
      %p205 = scmp.lt.s32.totalorder %s18, 2
      // Predicated region
      $region33: #{tpu_custom_call.1} parent=5 // pred_check
        %p206 = pneg %p205
      $region34: #{tpu_custom_call.1} parent=5 // pred_check_branch
        %208 = sbr.rel (%p206) target = $region36
      $region35: #{tpu_custom_call.1} parent=5 // pred_region
        // Predicated region
        $region37: #{tpu_custom_call.1} parent=35 // pred_check
          %p209 = pneg %p38
        $region38: #{tpu_custom_call.1} parent=35 // pred_check_branch
          %211 = sbr.rel (%p209) target = $region40
        $region39: #{tpu_custom_call.1} parent=35 // pred_region
          %s212 = sand.u32 %s28, 1
          %s213 = scalar_lea.sflag [#allocation5], %s212
          %s214 = sand.u32 %s28, 1
          %s215 = smul.addr %s214, 16
          %s216 = scalar_lea.vmem [#allocation4], %s215
          %218 = vsyncadd %s213, 0
          %s219 = smul.addr %s18, 4
          %s220 = smul.addr %s219, 4
          %s221 = scalar_lea.hbm %s0, %s220
          %s223 = sshll.u32 %s221, 4
          %s224 = int_to_ptr.hbm [resolvable:$true] %s223
          %s225 = sshll.u32 %s216, 4
          %s226 = int_to_ptr.vmem [resolvable:$true] %s225
          %228 = dma.hbm_to_vmem [thread:$0]  %s224, 256, %s226, %s213
        $region40: #{tpu_custom_call.1} parent=35 // pred_fallthru
          _
      $region36: #{tpu_custom_call.1} parent=5 // pred_fallthru
        _
      %p229 = scmp.le.s32.totalorder 1, %s18
      %p230 = scmp.lt.s32.totalorder %s18, 3
      %p231 = pnand %p229, %p230
      %p232 = pneg %p231
      // Predicated region
      $region41: #{tpu_custom_call.1} parent=5 // pred_check
        _
      $region42: #{tpu_custom_call.1} parent=5 // pred_check_branch
        %234 = sbr.rel (%p231) target = $region44
      $region43: #{tpu_custom_call.1} parent=5 // pred_region
        %s235 = ssub.s32 %s18, 1
        %s236 = sand.u32 %s31, 1
        %s237 = scalar_lea.sflag [#allocation5], %s236
        %s238 = sand.u32 %s31, 1
        %s239 = smul.addr %s238, 16
        %s240 = scalar_lea.vmem [#allocation4], %s239
        // Predicated region
        $region45: #{tpu_custom_call.1} parent=43 // pred_check
          %p241 = pneg %p44
        $region46: #{tpu_custom_call.1} parent=43 // pred_check_branch
          %243 = sbr.rel (%p241) target = $region48
        $region47: #{tpu_custom_call.1} parent=43 // pred_region
          %245 = dma.done %s237, 256
        $region48: #{tpu_custom_call.1} parent=43 // pred_fallthru
          _
        %s246 = sand.u32 %s31, 1
        %s247 = scalar_lea.sflag [#allocation5], %s246
        %s248 = sand.u32 %s31, 1
        %s249 = smul.addr %s248, 16
        %s250 = scalar_lea.vmem [#allocation4], %s249
        %p251 = pneg %p44
        %p252 = pneg %p41
        %p253 = pneg %p65
        %p254 = pneg %p62
        %p255 = pneg %p86
        %p256 = pneg %p83
        %p257 = pneg %p107
        %p258 = pneg %p104
        %p259 = pneg %p128
        %p260 = pneg %p125
        %p261 = pneg %p149
        %p262 = pneg %p146
        %p263 = pneg %p175
        %p264 = pneg %p172
        %s265 = sand.u32 %s162, 1
        %s266 = scalar_lea.sflag [#allocation6], %s265
        %s267 = sand.u32 %s162, 1
        %s268 = smul.addr %s267, 12
        %s269 = scalar_lea.vmem [#allocation7], %s268
        %v271 = vld [vmem:[%s5] sm:$0x7]
        %v272 = vld [vmem:[%s2] sm:$0xf]
        %v273 = vld [vmem:[%s4] sm:$0xf]
        %v274 = vld [vmem:[%s240] sm:$0xff]
        %v275 = vld [vmem:[%s240 + $0x8] sm:$0xf]
        %278 = vst [vmem:[#allocation1] ss:$2 sm:$0xff] %v274
        %s279 = scalar_lea.vmem [#allocation1], 16
        %280 = vst [vmem:[%s279] ss:$2 sm:$0xff] %v275
        %v281 = vld.sshfl [vmem:[#allocation1] sm:$0xff pattern:$0x75316420]
        %v282 = vld.sshfl [vmem:[#allocation1 + $0x8] sm:$0xff pattern:$0x75316420]
        %v283 = vld.sshfl [vmem:[#allocation1 + $0x10] sm:$0xff pattern:$0x75316420]
        %287 = vst [vmem:[#allocation2] sm:$0xf] %v281
        %288 = vst [vmem:[#allocation2 + $0x8] sm:$0xf] %v282
        %289 = vst [vmem:[#allocation2 + $0x10] sm:$0xf] %v283
        %v290 = vld [vmem:[%s240] sm:$0xff]
        %v291 = vld [vmem:[%s240 + $0x8] sm:$0xff]
        %s294 = scalar_lea.vmem [#allocation1], 1
        %295 = vst [vmem:[%s294] ss:$2 sm:$0xff] %v290
        %s296 = scalar_lea.vmem [#allocation1], 17
        %297 = vst [vmem:[%s296] ss:$2 sm:$0xff] %v291
        %v298 = vld.sshfl [vmem:[#allocation1] sm:$0xff pattern:$0x75316420]
        %v299 = vld.sshfl [vmem:[#allocation1 + $0x8] sm:$0xff pattern:$0x75316420]
        %v300 = vld.sshfl [vmem:[#allocation1 + $0x10] sm:$0xff pattern:$0x75316420]
        %v301 = vld.sshfl [vmem:[#allocation1 + $0x18] sm:$0xff pattern:$0x75316420]
        %302 = vrot.lane.b32.xlu0 %v298, 127
        %v303 = vpop.permute.xlu0 %302
        %304 = vrot.lane.b32.xlu0 %v299, 127
        %v305 = vpop.permute.xlu0 %304
        %306 = vrot.lane.b32.xlu0 %v300, 127
        %v307 = vpop.permute.xlu0 %306
        %308 = vrot.lane.b32.xlu0 %v301, 127
        %v309 = vpop.permute.xlu0 %308
        %vm310 = vcmask 1039360
        %v311 = vsel %vm310, %v303, %v305
        %v312 = vsel %vm310, %v305, %v307
        %v313 = vsel %vm310, %v307, %v309
        %317 = vst [vmem:[#allocation2] sm:$0xf0] %v311
        %318 = vst [vmem:[#allocation2 + $0x8] sm:$0xf0] %v312
        %319 = vst [vmem:[#allocation2 + $0x10] sm:$0xf0] %v313
        %v320 = vld [vmem:[%s240] sm:$0xff]
        %v321 = vld [vmem:[%s240 + $0x8] sm:$0xff]
        %324 = vst [vmem:[#allocation1] ss:$2 sm:$0xff] %v320
        %s325 = scalar_lea.vmem [#allocation1], 16
        %326 = vst [vmem:[%s325] ss:$2 sm:$0xff] %v321
        %v327 = vld.sshfl [vmem:[#allocation1] sm:$0xff pattern:$0x75316420]
        %v328 = vld.sshfl [vmem:[#allocation1 + $0x8] sm:$0xff pattern:$0x75316420]
        %v329 = vld.sshfl [vmem:[#allocation1 + $0x10] sm:$0xff pattern:$0x75316420]
        %v330 = vld.sshfl [vmem:[#allocation1 + $0x18] sm:$0xff pattern:$0x75316420]
        %331 = vrot.lane.b32.xlu0 %v327, 126
        %v332 = vpop.permute.xlu0 %331
        %333 = vrot.lane.b32.xlu0 %v328, 126
        %v334 = vpop.permute.xlu0 %333
        %335 = vrot.lane.b32.xlu0 %v329, 126
        %v336 = vpop.permute.xlu0 %335
        %337 = vrot.lane.b32.xlu0 %v330, 126
        %v338 = vpop.permute.xlu0 %337
        %vm339 = vcmask 1031168
        %v340 = vsel %vm339, %v332, %v334
        %v341 = vsel %vm339, %v334, %v336
        %v342 = vsel %vm339, %v336, %v338
        %346 = vst [vmem:[#allocation2 + $0x18] sm:$0xf] %v340
        %347 = vst [vmem:[#allocation2 + $0x20] sm:$0xf] %v341
        %348 = vst [vmem:[#allocation2 + $0x28] sm:$0xf] %v342
        %v349 = vld [vmem:[%s240] sm:$0xff]
        %v350 = vld [vmem:[%s240 + $0x8] sm:$0xff]
        %s353 = scalar_lea.vmem [#allocation1], 1
        %354 = vst [vmem:[%s353] ss:$2 sm:$0xff] %v349
        %s355 = scalar_lea.vmem [#allocation1], 17
        %356 = vst [vmem:[%s355] ss:$2 sm:$0xff] %v350
        %v357 = vld.sshfl [vmem:[#allocation1] sm:$0xff pattern:$0x75316420]
        %v358 = vld.sshfl [vmem:[#allocation1 + $0x8] sm:$0xff pattern:$0x75316420]
        %v359 = vld.sshfl [vmem:[#allocation1 + $0x10] sm:$0xff pattern:$0x75316420]
        %v360 = vld.sshfl [vmem:[#allocation1 + $0x18] sm:$0xff pattern:$0x75316420]
        %361 = vrot.lane.b32.xlu0 %v357, 104
        %v362 = vpop.permute.xlu0 %361
        %363 = vrot.lane.b32.xlu0 %v358, 104
        %v364 = vpop.permute.xlu0 %363
        %365 = vrot.lane.b32.xlu0 %v359, 104
        %v366 = vpop.permute.xlu0 %365
        %367 = vrot.lane.b32.xlu0 %v360, 104
        %v368 = vpop.permute.xlu0 %367
        %vm369 = vcmask 850944
        %v370 = vsel %vm369, %v362, %v364
        %v371 = vsel %vm369, %v364, %v366
        %v372 = vsel %vm369, %v366, %v368
        %376 = vst [vmem:[#allocation2 + $0x18] sm:$0xf0] %v370
        %377 = vst [vmem:[#allocation2 + $0x20] sm:$0xf0] %v371
        %378 = vst [vmem:[#allocation2 + $0x28] sm:$0xf0] %v372
        %v379 = vld [vmem:[%s240] sm:$0xff]
        %v380 = vld [vmem:[%s240 + $0x8] sm:$0xff]
        %383 = vst [vmem:[#allocation1] ss:$2 sm:$0xff] %v379
        %s384 = scalar_lea.vmem [#allocation1], 16
        %385 = vst [vmem:[%s384] ss:$2 sm:$0xff] %v380
        %v386 = vld.sshfl [vmem:[#allocation1] sm:$0xff pattern:$0x75316420]
        %v387 = vld.sshfl [vmem:[#allocation1 + $0x8] sm:$0xff pattern:$0x75316420]
        %v388 = vld.sshfl [vmem:[#allocation1 + $0x10] sm:$0xff pattern:$0x75316420]
        %v389 = vld.sshfl [vmem:[#allocation1 + $0x18] sm:$0xff pattern:$0x75316420]
        %390 = vrot.lane.b32.xlu0 %v386, 103
        %v391 = vpop.permute.xlu0 %390
        %392 = vrot.lane.b32.xlu0 %v387, 103
        %v393 = vpop.permute.xlu0 %392
        %394 = vrot.lane.b32.xlu0 %v388, 103
        %v395 = vpop.permute.xlu0 %394
        %396 = vrot.lane.b32.xlu0 %v389, 103
        %v397 = vpop.permute.xlu0 %396
        %vm398 = vcmask 842752
        %v399 = vsel %vm398, %v391, %v393
        %v400 = vsel %vm398, %v393, %v395
        %v401 = vsel %vm398, %v395, %v397
        %405 = vst [vmem:[#allocation2 + $0x30] sm:$0xf] %v399
        %406 = vst [vmem:[#allocation2 + $0x38] sm:$0xf] %v400
        %407 = vst [vmem:[#allocation2 + $0x40] sm:$0xf] %v401
        %v408 = vld [vmem:[%s240] sm:$0xff]
        %v409 = vld [vmem:[%s240 + $0x8] sm:$0xff]
        %s412 = scalar_lea.vmem [#allocation1], 1
        %413 = vst [vmem:[%s412] ss:$2 sm:$0xff] %v408
        %s414 = scalar_lea.vmem [#allocation1], 17
        %415 = vst [vmem:[%s414] ss:$2 sm:$0xff] %v409
        %v416 = vld.sshfl [vmem:[#allocation1] sm:$0xff pattern:$0x75316420]
        %v417 = vld.sshfl [vmem:[#allocation1 + $0x8] sm:$0xff pattern:$0x75316420]
        %v418 = vld.sshfl [vmem:[#allocation1 + $0x10] sm:$0xff pattern:$0x75316420]
        %v419 = vld.sshfl [vmem:[#allocation1 + $0x18] sm:$0xff pattern:$0x75316420]
        %420 = vrot.lane.b32.xlu0 %v416, 102
        %v421 = vpop.permute.xlu0 %420
        %422 = vrot.lane.b32.xlu0 %v417, 102
        %v423 = vpop.permute.xlu0 %422
        %424 = vrot.lane.b32.xlu0 %v418, 102
        %v425 = vpop.permute.xlu0 %424
        %426 = vrot.lane.b32.xlu0 %v419, 102
        %v427 = vpop.permute.xlu0 %426
        %vm428 = vcmask 834560
        %v429 = vsel %vm428, %v421, %v423
        %v430 = vsel %vm428, %v423, %v425
        %v431 = vsel %vm428, %v425, %v427
        %435 = vst [vmem:[#allocation2 + $0x30] sm:$0xf0] %v429
        %436 = vst [vmem:[#allocation2 + $0x38] sm:$0xf0] %v430
        %437 = vst [vmem:[#allocation2 + $0x40] sm:$0xf0] %v431
        %v438 = vld [vmem:[%s240] sm:$0xff]
        %v439 = vld [vmem:[%s240 + $0x8] sm:$0xff]
        %442 = vst [vmem:[#allocation1] ss:$2 sm:$0xff] %v438
        %s443 = scalar_lea.vmem [#allocation1], 16
        %444 = vst [vmem:[%s443] ss:$2 sm:$0xff] %v439
        %v445 = vld.sshfl [vmem:[#allocation1] sm:$0xff pattern:$0x75316420]
        %v446 = vld.sshfl [vmem:[#allocation1 + $0x8] sm:$0xff pattern:$0x75316420]
        %v447 = vld.sshfl [vmem:[#allocation1 + $0x10] sm:$0xff pattern:$0x75316420]
        %v448 = vld.sshfl [vmem:[#allocation1 + $0x18] sm:$0xff pattern:$0x75316420]
        %449 = vrot.lane.b32.xlu0 %v445, 80
        %v450 = vpop.permute.xlu0 %449
        %451 = vrot.lane.b32.xlu0 %v446, 80
        %v452 = vpop.permute.xlu0 %451
        %453 = vrot.lane.b32.xlu0 %v447, 80
        %v454 = vpop.permute.xlu0 %453
        %455 = vrot.lane.b32.xlu0 %v448, 80
        %v456 = vpop.permute.xlu0 %455
        %vm457 = vcmask 654336
        %v458 = vsel %vm457, %v450, %v452
        %v459 = vsel %vm457, %v452, %v454
        %v460 = vsel %vm457, %v454, %v456
        %464 = vst [vmem:[#allocation2 + $0x48] sm:$0xf] %v458
        %465 = vst [vmem:[#allocation2 + $0x50] sm:$0xf] %v459
        %466 = vst [vmem:[#allocation2 + $0x58] sm:$0xf] %v460
        %v467 = vld [vmem:[%s240] sm:$0xff]
        %v468 = vld [vmem:[%s240 + $0x8] sm:$0xff]
        %s471 = scalar_lea.vmem [#allocation1], 1
        %472 = vst [vmem:[%s471] ss:$2 sm:$0xff] %v467
        %s473 = scalar_lea.vmem [#allocation1], 17
        %474 = vst [vmem:[%s473] ss:$2 sm:$0xff] %v468
        %v475 = vld.sshfl [vmem:[#allocation1] sm:$0xff pattern:$0x75316420]
        %v476 = vld.sshfl [vmem:[#allocation1 + $0x8] sm:$0xff pattern:$0x75316420]
        %v477 = vld.sshfl [vmem:[#allocation1 + $0x10] sm:$0xff pattern:$0x75316420]
        %v478 = vld.sshfl [vmem:[#allocation1 + $0x18] sm:$0xff pattern:$0x75316420]
        %479 = vrot.lane.b32.xlu0 %v475, 79
        %v480 = vpop.permute.xlu0 %479
        %481 = vrot.lane.b32.xlu0 %v476, 79
        %v482 = vpop.permute.xlu0 %481
        %483 = vrot.lane.b32.xlu0 %v477, 79
        %v484 = vpop.permute.xlu0 %483
        %485 = vrot.lane.b32.xlu0 %v478, 79
        %v486 = vpop.permute.xlu0 %485
        %vm487 = vcmask 646144
        %v488 = vsel %vm487, %v480, %v482
        %v489 = vsel %vm487, %v482, %v484
        %v490 = vsel %vm487, %v484, %v486
        %494 = vst [vmem:[#allocation2 + $0x48] sm:$0xf0] %v488
        %495 = vst [vmem:[#allocation2 + $0x50] sm:$0xf0] %v489
        %496 = vst [vmem:[#allocation2 + $0x58] sm:$0xf0] %v490
        %v497 = vld [vmem:[%s240] sm:$0xff]
        %v498 = vld [vmem:[%s240 + $0x8] sm:$0xff]
        %501 = vst [vmem:[#allocation1] ss:$2 sm:$0xff] %v497
        %s502 = scalar_lea.vmem [#allocation1], 16
        %503 = vst [vmem:[%s502] ss:$2 sm:$0xff] %v498
        %v504 = vld.sshfl [vmem:[#allocation1] sm:$0xff pattern:$0x75316420]
        %v505 = vld.sshfl [vmem:[#allocation1 + $0x8] sm:$0xff pattern:$0x75316420]
        %v506 = vld.sshfl [vmem:[#allocation1 + $0x10] sm:$0xff pattern:$0x75316420]
        %v507 = vld.sshfl [vmem:[#allocation1 + $0x18] sm:$0xff pattern:$0x75316420]
        %508 = vrot.lane.b32.xlu0 %v504, 78
        %v509 = vpop.permute.xlu0 %508
        %510 = vrot.lane.b32.xlu0 %v505, 78
        %v511 = vpop.permute.xlu0 %510
        %512 = vrot.lane.b32.xlu0 %v506, 78
        %v513 = vpop.permute.xlu0 %512
        %514 = vrot.lane.b32.xlu0 %v507, 78
        %v515 = vpop.permute.xlu0 %514
        %vm516 = vcmask 637952
        %v517 = vsel %vm516, %v509, %v511
        %v518 = vsel %vm516, %v511, %v513
        %v519 = vsel %vm516, %v513, %v515
        %523 = vst [vmem:[#allocation2 + $0x60] sm:$0xf] %v517
        %524 = vst [vmem:[#allocation2 + $0x68] sm:$0xf] %v518
        %525 = vst [vmem:[#allocation2 + $0x70] sm:$0xf] %v519
        %v526 = vld [vmem:[%s1] sm:$0x3]
        %v527 = vld [vmem:[#allocation2] sm:$0xff]
        %v528 = vld [vmem:[#allocation2 + $0x8] sm:$0xff]
        %v529 = vld [vmem:[#allocation2 + $0x10] sm:$0xff]
        %v530 = vld [vmem:[#allocation2 + $0x18] sm:$0xff]
        %v531 = vld [vmem:[#allocation2 + $0x20] sm:$0xff]
        %v532 = vld [vmem:[#allocation2 + $0x28] sm:$0xff]
        %v533 = vld [vmem:[#allocation2 + $0x30] sm:$0xff]
        %v534 = vld [vmem:[#allocation2 + $0x38] sm:$0xff]
        %v535 = vld [vmem:[#allocation2 + $0x40] sm:$0xff]
        %v536 = vld [vmem:[#allocation2 + $0x48] sm:$0xff]
        %v537 = vld [vmem:[#allocation2 + $0x50] sm:$0xff]
        %v538 = vld [vmem:[#allocation2 + $0x58] sm:$0xff]
        %v539 = vld [vmem:[#allocation2 + $0x60] sm:$0xf]
        %v540 = vld [vmem:[#allocation2 + $0x68] sm:$0xf]
        %v541 = vld [vmem:[#allocation2 + $0x70] sm:$0xf]
        %v542 = vpack.c.bf16 %v530, %v527
        %v543 = vpack.c.bf16 %v531, %v528
        %v544 = vpack.c.bf16 %v532, %v529
        %v545 = vpack.c.bf16 %v536, %v533
        %v546 = vpack.c.bf16 %v537, %v534
        %v547 = vpack.c.bf16 %v538, %v535
        %v548 = vpack.c.bf16 %v539, %v539
        %v549 = vpack.c.bf16 %v540, %v540
        %v550 = vpack.c.bf16 %v541, %v541
        %552 = vset.pattern.permute.xlu0 0
        %553 = vperm.xlu0 %552, %v272
        %v554 = vpop.permute.xlu0 %553
        %vm556 = vcmask 293888
        %v558 = vsel %vm556, %v526, 0
        %vm560 = vcmask 1041408
        %v562 = vsel %vm560, %v548, 0
        %v565 = vsel %vm560, %v549, 0
        %v568 = vsel %vm560, %v550, 0
        %570 = vmatpush.bf16.msra.mxu0 0
        %571 = vmatpush.bf16.msra.mxu0 0
        %572 = vmatpush.bf16.msra.mxu0 0
        %573 = vmatpush.bf16.msra.mxu0 0
        %574 = vmatpush.bf16.msra.mxu0 0
        %575 = vmatpush.bf16.msra.mxu0 %v562
        %576 = vmatpush.bf16.msra.mxu0 %v545
        %577 = vmatpush.bf16.msra.mxu0 %v542
        %578 = vmatmul.bf16.gmra.mxu0 %v558
        %v579 = vpop.f32.mrf.mxu0
        %v580 = vadd.f32 %v554, %v579
        %v581 = vpop.f32.mrf.mxu0
        %582 = vdwg.mxu0
        %583 = vmatpush.bf16.msra.mxu0 0
        %584 = vmatpush.bf16.msra.mxu0 0
        %585 = vmatpush.bf16.msra.mxu0 0
        %586 = vmatpush.bf16.msra.mxu0 0
        %587 = vmatpush.bf16.msra.mxu0 0
        %588 = vmatpush.bf16.msra.mxu0 %v565
        %589 = vmatpush.bf16.msra.mxu0 %v546
        %590 = vmatpush.bf16.msra.mxu0 %v543
        %591 = vmatmul.bf16.gmra.mxu0 %v558
        %v592 = vpop.f32.mrf.mxu0
        %v593 = vadd.f32 %v554, %v592
        %v594 = vpop.f32.mrf.mxu0
        %595 = vdwg.mxu0
        %596 = vmatpush.bf16.msra.mxu0 0
        %597 = vmatpush.bf16.msra.mxu0 0
        %598 = vmatpush.bf16.msra.mxu0 0
        %599 = vmatpush.bf16.msra.mxu0 0
        %600 = vmatpush.bf16.msra.mxu0 0
        %601 = vmatpush.bf16.msra.mxu0 %v568
        %602 = vmatpush.bf16.msra.mxu0 %v547
        %603 = vmatpush.bf16.msra.mxu0 %v544
        %604 = vmatmul.bf16.gmra.mxu0 %v558
        %v605 = vpop.f32.mrf.mxu0
        %v606 = vadd.f32 %v554, %v605
        %v607 = vpop.f32.mrf.mxu0
        %608 = vdwg.mxu0
        %v610 = vperm.slane %v271, 0
        %v611 = vperm.slane %v271, 1
        %v612 = vperm.slane %v271, 2
        %v616 = vmul.f32 %v580, %v610
        %v617 = vmul.f32 %v593, %v611
        %v618 = vmul.f32 %v606, %v612
        %vm619 = vcmask 1043456
        %v620 = vsel %vm619, %v616, 0.0
        %v621 = vsel %vm619, %v617, 0.0
        %v622 = vadd.f32 %v620, %v621
        %v623 = vsel %vm619, %v618, 0.0
        %v624 = vadd.f32 %v622, %v623
        %625 = vadd.xlane.f32.xlu0 %v624
        %v626 = vpop.xlane.xlu0 %625
        %v627 = vmul.f32 %v626, 0.00390625
        %v628 = vmul.f32 %v616, %v580
        %v629 = vmul.f32 %v617, %v593
        %v630 = vmul.f32 %v618, %v606
        %v631 = vsel %vm619, %v628, 0.0
        %v632 = vsel %vm619, %v629, 0.0
        %v633 = vadd.f32 %v631, %v632
        %v634 = vsel %vm619, %v630, 0.0
        %v635 = vadd.f32 %v633, %v634
        %636 = vadd.xlane.f32.xlu0 %v635
        %v637 = vpop.xlane.xlu0 %636
        %v638 = vmul.f32 %v637, 0.00390625
        %v639 = vmul.f32 %v627, %v627
        %v640 = vsub.f32 %v638, %v639
        %v641 = vsub.f32 %v580, %v627
        %v642 = vsub.f32 %v593, %v627
        %v643 = vsub.f32 %v606, %v627
        %v644 = vadd.f32 %v640, 1e-05
        %v645 = vrsqrt.pop %v644
        %v646 = vmul.f32 %v645, %v644
        %v647 = vmul.f32 %v646, %v645
        %v648 = vmul.f32 0.5, %v647
        %v649 = vsub.f32 1.5, %v648
        %v650 = vmul.f32 %v645, %v649
        %vm651 = vweird.f32 %v644
        %vm652 = vweird.f32 %v645
        %vm653 = vmor %vm651, %vm652
        %v654 = vsel %vm653, %v645, %v650
        %v655 = vmul.f32 %v641, %v654
        %v656 = vmul.f32 %v642, %v654
        %v657 = vmul.f32 %v643, %v654
        %v658 = vmax.f32 %v655, 0.0
        %v659 = vmax.f32 %v656, 0.0
        %v660 = vmax.f32 %v657, 0.0
        %v661 = vmul.f32 %v658, %v610
        %v662 = vmul.f32 %v659, %v611
        %v663 = vmul.f32 %v660, %v612
        %664 = vst [vmem:[#allocation3] sm:$0xf] 0.0
        %665 = vst [vmem:[#allocation3 + $0x10] sm:$0xf] 0.0
        %v668 = vrot.slane %v662, 4
        %v669 = vsel %vm619, %v661, %v668
        %671 = vst [vmem:[#allocation3 + $0x4] sm:$0xff] %v669
        %672 = vst [vmem:[#allocation3 + $0xc] sm:$0xf] %v663
        %v673 = vld [vmem:[#allocation3] sm:$0xff]
        %v674 = vld [vmem:[#allocation3 + $0x8] sm:$0xff]
        %677 = vst [vmem:[#allocation1] ss:$2 sm:$0xff] %v673
        %s678 = scalar_lea.vmem [#allocation1], 16
        %679 = vst [vmem:[%s678] ss:$2 sm:$0xff] %v674
        %v680 = vld.sshfl [vmem:[#allocation1] sm:$0xff pattern:$0x75316420]
        %v681 = vld.sshfl [vmem:[#allocation1 + $0x8] sm:$0xff pattern:$0x75316420]
        %v682 = vld.sshfl [vmem:[#allocation1 + $0x10] sm:$0xff pattern:$0x75316420]
        %v683 = vld.sshfl [vmem:[#allocation1 + $0x18] sm:$0xff pattern:$0x75316420]
        %684 = vrot.lane.b32.xlu0 %v680, 25
        %v685 = vpop.permute.xlu0 %684
        %686 = vrot.lane.b32.xlu0 %v681, 25
        %v687 = vpop.permute.xlu0 %686
        %688 = vrot.lane.b32.xlu0 %v682, 25
        %v689 = vpop.permute.xlu0 %688
        %690 = vrot.lane.b32.xlu0 %v683, 25
        %v691 = vpop.permute.xlu0 %690
        %vm692 = vcmask 203776
        %v693 = vsel %vm692, %v685, %v687
        %v694 = vsel %vm692, %v687, %v689
        %v695 = vsel %vm692, %v689, %v691
        %699 = vst [vmem:[#allocation2] sm:$0xf] %v693
        %700 = vst [vmem:[#allocation2 + $0x8] sm:$0xf] %v694
        %701 = vst [vmem:[#allocation2 + $0x10] sm:$0xf] %v695
        %v702 = vld [vmem:[#allocation3] sm:$0xff]
        %v703 = vld [vmem:[#allocation3 + $0x8] sm:$0xff]
        %s706 = scalar_lea.vmem [#allocation1], 1
        %707 = vst [vmem:[%s706] ss:$2 sm:$0xff] %v702
        %s708 = scalar_lea.vmem [#allocation1], 17
        %709 = vst [vmem:[%s708] ss:$2 sm:$0xff] %v703
        %v710 = vld.sshfl [vmem:[#allocation1] sm:$0xff pattern:$0x75316420]
        %v711 = vld.sshfl [vmem:[#allocation1 + $0x8] sm:$0xff pattern:$0x75316420]
        %v712 = vld.sshfl [vmem:[#allocation1 + $0x10] sm:$0xff pattern:$0x75316420]
        %v713 = vld.sshfl [vmem:[#allocation1 + $0x18] sm:$0xff pattern:$0x75316420]
        %714 = vrot.lane.b32.xlu0 %v710, 24
        %v715 = vpop.permute.xlu0 %714
        %716 = vrot.lane.b32.xlu0 %v711, 24
        %v717 = vpop.permute.xlu0 %716
        %718 = vrot.lane.b32.xlu0 %v712, 24
        %v719 = vpop.permute.xlu0 %718
        %720 = vrot.lane.b32.xlu0 %v713, 24
        %v721 = vpop.permute.xlu0 %720
        %vm722 = vcmask 195584
        %v723 = vsel %vm722, %v715, %v717
        %v724 = vsel %vm722, %v717, %v719
        %v725 = vsel %vm722, %v719, %v721
        %729 = vst [vmem:[#allocation2] sm:$0xf0] %v723
        %730 = vst [vmem:[#allocation2 + $0x8] sm:$0xf0] %v724
        %731 = vst [vmem:[#allocation2 + $0x10] sm:$0xf0] %v725
        %v732 = vld [vmem:[#allocation3] sm:$0xff]
        %v733 = vld [vmem:[#allocation3 + $0x8] sm:$0xff]
        %736 = vst [vmem:[#allocation1] ss:$2 sm:$0xff] %v732
        %s737 = scalar_lea.vmem [#allocation1], 16
        %738 = vst [vmem:[%s737] ss:$2 sm:$0xff] %v733
        %v739 = vld.sshfl [vmem:[#allocation1] sm:$0xff pattern:$0x75316420]
        %v740 = vld.sshfl [vmem:[#allocation1 + $0x8] sm:$0xff pattern:$0x75316420]
        %v741 = vld.sshfl [vmem:[#allocation1 + $0x10] sm:$0xff pattern:$0x75316420]
        %v742 = vld.sshfl [vmem:[#allocation1 + $0x18] sm:$0xff pattern:$0x75316420]
        %743 = vrot.lane.b32.xlu0 %v739, 23
        %v744 = vpop.permute.xlu0 %743
        %745 = vrot.lane.b32.xlu0 %v740, 23
        %v746 = vpop.permute.xlu0 %745
        %747 = vrot.lane.b32.xlu0 %v741, 23
        %v748 = vpop.permute.xlu0 %747
        %749 = vrot.lane.b32.xlu0 %v742, 23
        %v750 = vpop.permute.xlu0 %749
        %vm751 = vcmask 187392
        %v752 = vsel %vm751, %v744, %v746
        %v753 = vsel %vm751, %v746, %v748
        %v754 = vsel %vm751, %v748, %v750
        %758 = vst [vmem:[#allocation2 + $0x18] sm:$0xf] %v752
        %759 = vst [vmem:[#allocation2 + $0x20] sm:$0xf] %v753
        %760 = vst [vmem:[#allocation2 + $0x28] sm:$0xf] %v754
        %v761 = vld [vmem:[#allocation3] sm:$0xff]
        %v762 = vld [vmem:[#allocation3 + $0x8] sm:$0xff]
        %s765 = scalar_lea.vmem [#allocation1], 1
        %766 = vst [vmem:[%s765] ss:$2 sm:$0xff] %v761
        %s767 = scalar_lea.vmem [#allocation1], 17
        %768 = vst [vmem:[%s767] ss:$2 sm:$0xff] %v762
        %v769 = vld.sshfl [vmem:[#allocation1] sm:$0xff pattern:$0x75316420]
        %v770 = vld.sshfl [vmem:[#allocation1 + $0x8] sm:$0xff pattern:$0x75316420]
        %v771 = vld.sshfl [vmem:[#allocation1 + $0x10] sm:$0xff pattern:$0x75316420]
        %v772 = vld.sshfl [vmem:[#allocation1 + $0x18] sm:$0xff pattern:$0x75316420]
        %773 = vrot.lane.b32.xlu0 %v769, 1
        %v774 = vpop.permute.xlu0 %773
        %775 = vrot.lane.b32.xlu0 %v770, 1
        %v776 = vpop.permute.xlu0 %775
        %777 = vrot.lane.b32.xlu0 %v771, 1
        %v778 = vpop.permute.xlu0 %777
        %779 = vrot.lane.b32.xlu0 %v772, 1
        %v780 = vpop.permute.xlu0 %779
        %vm781 = vcmask 7168
        %v782 = vsel %vm781, %v774, %v776
        %v783 = vsel %vm781, %v776, %v778
        %v784 = vsel %vm781, %v778, %v780
        %788 = vst [vmem:[#allocation2 + $0x18] sm:$0xf0] %v782
        %789 = vst [vmem:[#allocation2 + $0x20] sm:$0xf0] %v783
        %790 = vst [vmem:[#allocation2 + $0x28] sm:$0xf0] %v784
        %v791 = vld [vmem:[#allocation3 + $0x4] sm:$0xff]
        %v792 = vld [vmem:[#allocation3 + $0xc] sm:$0xf]
        %795 = vst [vmem:[#allocation1] ss:$2 sm:$0xff] %v791
        %s796 = scalar_lea.vmem [#allocation1], 16
        %797 = vst [vmem:[%s796] ss:$2 sm:$0xff] %v792
        %v798 = vld.sshfl [vmem:[#allocation1] sm:$0xff pattern:$0x75316420]
        %v799 = vld.sshfl [vmem:[#allocation1 + $0x8] sm:$0xff pattern:$0x75316420]
        %v800 = vld.sshfl [vmem:[#allocation1 + $0x10] sm:$0xff pattern:$0x75316420]
        %804 = vst [vmem:[#allocation2 + $0x30] sm:$0xf] %v798
        %805 = vst [vmem:[#allocation2 + $0x38] sm:$0xf] %v799
        %806 = vst [vmem:[#allocation2 + $0x40] sm:$0xf] %v800
        %v807 = vld [vmem:[#allocation3 + $0x4] sm:$0xff]
        %v808 = vld [vmem:[#allocation3 + $0xc] sm:$0xff]
        %s811 = scalar_lea.vmem [#allocation1], 1
        %812 = vst [vmem:[%s811] ss:$2 sm:$0xff] %v807
        %s813 = scalar_lea.vmem [#allocation1], 17
        %814 = vst [vmem:[%s813] ss:$2 sm:$0xff] %v808
        %v815 = vld.sshfl [vmem:[#allocation1] sm:$0xff pattern:$0x75316420]
        %v816 = vld.sshfl [vmem:[#allocation1 + $0x8] sm:$0xff pattern:$0x75316420]
        %v817 = vld.sshfl [vmem:[#allocation1 + $0x10] sm:$0xff pattern:$0x75316420]
        %v818 = vld.sshfl [vmem:[#allocation1 + $0x18] sm:$0xff pattern:$0x75316420]
        %819 = vrot.lane.b32.xlu0 %v815, 127
        %v820 = vpop.permute.xlu0 %819
        %821 = vrot.lane.b32.xlu0 %v816, 127
        %v822 = vpop.permute.xlu0 %821
        %823 = vrot.lane.b32.xlu0 %v817, 127
        %v824 = vpop.permute.xlu0 %823
        %825 = vrot.lane.b32.xlu0 %v818, 127
        %v826 = vpop.permute.xlu0 %825
        %v827 = vsel %vm310, %v820, %v822
        %v828 = vsel %vm310, %v822, %v824
        %v829 = vsel %vm310, %v824, %v826
        %833 = vst [vmem:[#allocation2 + $0x30] sm:$0xf0] %v827
        %834 = vst [vmem:[#allocation2 + $0x38] sm:$0xf0] %v828
        %835 = vst [vmem:[#allocation2 + $0x40] sm:$0xf0] %v829
        %v836 = vld [vmem:[#allocation3 + $0x4] sm:$0xff]
        %v837 = vld [vmem:[#allocation3 + $0xc] sm:$0xff]
        %840 = vst [vmem:[#allocation1] ss:$2 sm:$0xff] %v836
        %s841 = scalar_lea.vmem [#allocation1], 16
        %842 = vst [vmem:[%s841] ss:$2 sm:$0xff] %v837
        %v843 = vld.sshfl [vmem:[#allocation1] sm:$0xff pattern:$0x75316420]
        %v844 = vld.sshfl [vmem:[#allocation1 + $0x8] sm:$0xff pattern:$0x75316420]
        %v845 = vld.sshfl [vmem:[#allocation1 + $0x10] sm:$0xff pattern:$0x75316420]
        %v846 = vld.sshfl [vmem:[#allocation1 + $0x18] sm:$0xff pattern:$0x75316420]
        %847 = vrot.lane.b32.xlu0 %v843, 105
        %v848 = vpop.permute.xlu0 %847
        %849 = vrot.lane.b32.xlu0 %v844, 105
        %v850 = vpop.permute.xlu0 %849
        %851 = vrot.lane.b32.xlu0 %v845, 105
        %v852 = vpop.permute.xlu0 %851
        %853 = vrot.lane.b32.xlu0 %v846, 105
        %v854 = vpop.permute.xlu0 %853
        %vm855 = vcmask 859136
        %v856 = vsel %vm855, %v848, %v850
        %v857 = vsel %vm855, %v850, %v852
        %v858 = vsel %vm855, %v852, %v854
        %862 = vst [vmem:[#allocation2 + $0x48] sm:$0xf] %v856
        %863 = vst [vmem:[#allocation2 + $0x50] sm:$0xf] %v857
        %864 = vst [vmem:[#allocation2 + $0x58] sm:$0xf] %v858
        %v865 = vld [vmem:[#allocation3 + $0x4] sm:$0xff]
        %v866 = vld [vmem:[#allocation3 + $0xc] sm:$0xff]
        %s869 = scalar_lea.vmem [#allocation1], 1
        %870 = vst [vmem:[%s869] ss:$2 sm:$0xff] %v865
        %s871 = scalar_lea.vmem [#allocation1], 17
        %872 = vst [vmem:[%s871] ss:$2 sm:$0xff] %v866
        %v873 = vld.sshfl [vmem:[#allocation1] sm:$0xff pattern:$0x75316420]
        %v874 = vld.sshfl [vmem:[#allocation1 + $0x8] sm:$0xff pattern:$0x75316420]
        %v875 = vld.sshfl [vmem:[#allocation1 + $0x10] sm:$0xff pattern:$0x75316420]
        %v876 = vld.sshfl [vmem:[#allocation1 + $0x18] sm:$0xff pattern:$0x75316420]
        %877 = vrot.lane.b32.xlu0 %v873, 104
        %v878 = vpop.permute.xlu0 %877
        %879 = vrot.lane.b32.xlu0 %v874, 104
        %v880 = vpop.permute.xlu0 %879
        %881 = vrot.lane.b32.xlu0 %v875, 104
        %v882 = vpop.permute.xlu0 %881
        %883 = vrot.lane.b32.xlu0 %v876, 104
        %v884 = vpop.permute.xlu0 %883
        %v885 = vsel %vm369, %v878, %v880
        %v886 = vsel %vm369, %v880, %v882
        %v887 = vsel %vm369, %v882, %v884
        %891 = vst [vmem:[#allocation2 + $0x48] sm:$0xf0] %v885
        %892 = vst [vmem:[#allocation2 + $0x50] sm:$0xf0] %v886
        %893 = vst [vmem:[#allocation2 + $0x58] sm:$0xf0] %v887
        %v894 = vld [vmem:[#allocation3 + $0x4] sm:$0xff]
        %v895 = vld [vmem:[#allocation3 + $0xc] sm:$0xff]
        %898 = vst [vmem:[#allocation1] ss:$2 sm:$0xff] %v894
        %s899 = scalar_lea.vmem [#allocation1], 16
        %900 = vst [vmem:[%s899] ss:$2 sm:$0xff] %v895
        %v901 = vld.sshfl [vmem:[#allocation1] sm:$0xff pattern:$0x75316420]
        %v902 = vld.sshfl [vmem:[#allocation1 + $0x8] sm:$0xff pattern:$0x75316420]
        %v903 = vld.sshfl [vmem:[#allocation1 + $0x10] sm:$0xff pattern:$0x75316420]
        %v904 = vld.sshfl [vmem:[#allocation1 + $0x18] sm:$0xff pattern:$0x75316420]
        %905 = vrot.lane.b32.xlu0 %v901, 103
        %v906 = vpop.permute.xlu0 %905
        %907 = vrot.lane.b32.xlu0 %v902, 103
        %v908 = vpop.permute.xlu0 %907
        %909 = vrot.lane.b32.xlu0 %v903, 103
        %v910 = vpop.permute.xlu0 %909
        %911 = vrot.lane.b32.xlu0 %v904, 103
        %v912 = vpop.permute.xlu0 %911
        %v913 = vsel %vm398, %v906, %v908
        %v914 = vsel %vm398, %v908, %v910
        %v915 = vsel %vm398, %v910, %v912
        %919 = vst [vmem:[#allocation2 + $0x60] sm:$0xf] %v913
        %920 = vst [vmem:[#allocation2 + $0x68] sm:$0xf] %v914
        %921 = vst [vmem:[#allocation2 + $0x70] sm:$0xf] %v915
        %v922 = vld [vmem:[%s3] sm:$0x3]
        %v923 = vld [vmem:[#allocation2] sm:$0xff]
        %v924 = vld [vmem:[#allocation2 + $0x8] sm:$0xff]
        %v925 = vld [vmem:[#allocation2 + $0x10] sm:$0xff]
        %v926 = vld [vmem:[#allocation2 + $0x18] sm:$0xff]
        %v927 = vld [vmem:[#allocation2 + $0x20] sm:$0xff]
        %v928 = vld [vmem:[#allocation2 + $0x28] sm:$0xff]
        %v929 = vld [vmem:[#allocation2 + $0x30] sm:$0xff]
        %v930 = vld [vmem:[#allocation2 + $0x38] sm:$0xff]
        %v931 = vld [vmem:[#allocation2 + $0x40] sm:$0xff]
        %v932 = vld [vmem:[#allocation2 + $0x48] sm:$0xff]
        %v933 = vld [vmem:[#allocation2 + $0x50] sm:$0xff]
        %v934 = vld [vmem:[#allocation2 + $0x58] sm:$0xff]
        %v935 = vld [vmem:[#allocation2 + $0x60] sm:$0xf]
        %v936 = vld [vmem:[#allocation2 + $0x68] sm:$0xf]
        %v937 = vld [vmem:[#allocation2 + $0x70] sm:$0xf]
        %v938 = vpack.c.bf16 %v926, %v923
        %v939 = vpack.c.bf16 %v927, %v924
        %v940 = vpack.c.bf16 %v928, %v925
        %v941 = vpack.c.bf16 %v932, %v929
        %v942 = vpack.c.bf16 %v933, %v930
        %v943 = vpack.c.bf16 %v934, %v931
        %v944 = vpack.c.bf16 %v935, %v935
        %v945 = vpack.c.bf16 %v936, %v936
        %v946 = vpack.c.bf16 %v937, %v937
        %948 = vset.pattern.permute.xlu0 0
        %949 = vperm.xlu0 %948, %v273
        %v950 = vpop.permute.xlu0 %949
        %v953 = vsel %vm556, %v922, 0
        %v956 = vsel %vm560, %v944, 0
        %v959 = vsel %vm560, %v945, 0
        %v962 = vsel %vm560, %v946, 0
        %964 = vmatpush.bf16.msra.mxu0 0
        %965 = vmatpush.bf16.msra.mxu0 0
        %966 = vmatpush.bf16.msra.mxu0 0
        %967 = vmatpush.bf16.msra.mxu0 0
        %968 = vmatpush.bf16.msra.mxu0 0
        %969 = vmatpush.bf16.msra.mxu0 %v956
        %970 = vmatpush.bf16.msra.mxu0 %v941
        %971 = vmatpush.bf16.msra.mxu0 %v938
        %972 = vmatmul.bf16.gmra.mxu0 %v953
        %v973 = vpop.f32.mrf.mxu0
        %v974 = vadd.f32 %v950, %v973
        %v975 = vpop.f32.mrf.mxu0
        %976 = vdwg.mxu0
        %977 = vmatpush.bf16.msra.mxu0 0
        %978 = vmatpush.bf16.msra.mxu0 0
        %979 = vmatpush.bf16.msra.mxu0 0
        %980 = vmatpush.bf16.msra.mxu0 0
        %981 = vmatpush.bf16.msra.mxu0 0
        %982 = vmatpush.bf16.msra.mxu0 %v959
        %983 = vmatpush.bf16.msra.mxu0 %v942
        %984 = vmatpush.bf16.msra.mxu0 %v939
        %985 = vmatmul.bf16.gmra.mxu0 %v953
        %v986 = vpop.f32.mrf.mxu0
        %v987 = vadd.f32 %v950, %v986
        %v988 = vpop.f32.mrf.mxu0
        %989 = vdwg.mxu0
        %990 = vmatpush.bf16.msra.mxu0 0
        %991 = vmatpush.bf16.msra.mxu0 0
        %992 = vmatpush.bf16.msra.mxu0 0
        %993 = vmatpush.bf16.msra.mxu0 0
        %994 = vmatpush.bf16.msra.mxu0 0
        %995 = vmatpush.bf16.msra.mxu0 %v962
        %996 = vmatpush.bf16.msra.mxu0 %v943
        %997 = vmatpush.bf16.msra.mxu0 %v940
        %998 = vmatmul.bf16.gmra.mxu0 %v953
        %v999 = vpop.f32.mrf.mxu0
        %v1000 = vadd.f32 %v950, %v999
        %v1001 = vpop.f32.mrf.mxu0
        %1002 = vdwg.mxu0
        %v1003 = vmul.f32 %v974, %v610
        %v1004 = vmul.f32 %v987, %v611
        %v1005 = vmul.f32 %v1000, %v612
        %v1006 = vsel %vm619, %v1003, 0.0
        %v1007 = vsel %vm619, %v1004, 0.0
        %v1008 = vadd.f32 %v1006, %v1007
        %v1009 = vsel %vm619, %v1005, 0.0
        %v1010 = vadd.f32 %v1008, %v1009
        %1011 = vadd.xlane.f32.xlu0 %v1010
        %v1012 = vpop.xlane.xlu0 %1011
        %v1013 = vmul.f32 %v1012, 0.00390625
        %v1014 = vmul.f32 %v1003, %v974
        %v1015 = vmul.f32 %v1004, %v987
        %v1016 = vmul.f32 %v1005, %v1000
        %v1017 = vsel %vm619, %v1014, 0.0
        %v1018 = vsel %vm619, %v1015, 0.0
        %v1019 = vadd.f32 %v1017, %v1018
        %v1020 = vsel %vm619, %v1016, 0.0
        %v1021 = vadd.f32 %v1019, %v1020
        %1022 = vadd.xlane.f32.xlu0 %v1021
        %v1023 = vpop.xlane.xlu0 %1022
        %v1024 = vmul.f32 %v1023, 0.00390625
        %v1025 = vmul.f32 %v1013, %v1013
        %v1026 = vsub.f32 %v1024, %v1025
        %v1027 = vsub.f32 %v974, %v1013
        %v1028 = vsub.f32 %v987, %v1013
        %v1029 = vsub.f32 %v1000, %v1013
        %v1030 = vadd.f32 %v1026, 1e-05
        %v1031 = vrsqrt.pop %v1030
        %v1032 = vmul.f32 %v1031, %v1030
        %v1033 = vmul.f32 %v1032, %v1031
        %v1034 = vmul.f32 0.5, %v1033
        %v1035 = vsub.f32 1.5, %v1034
        %v1036 = vmul.f32 %v1031, %v1035
        %vm1037 = vweird.f32 %v1030
        %vm1038 = vweird.f32 %v1031
        %vm1039 = vmor %vm1037, %vm1038
        %v1040 = vsel %vm1039, %v1031, %v1036
        %v1041 = vmul.f32 %v1027, %v1040
        %v1042 = vmul.f32 %v1028, %v1040
        %v1043 = vmul.f32 %v1029, %v1040
        %v1044 = vld [vmem:[%s240] sm:$0xff]
        %v1045 = vld [vmem:[%s240 + $0x8] sm:$0xff]
        %v1049 = vrot.slane %v1042, 4
        %v1050 = vsel %vm619, %v1041, %v1049
        %1051 = vrot.lane.b32.xlu0 %v1050, 25
        %v1052 = vpop.permute.xlu0 %1051
        %1053 = vrot.lane.b32.xlu0 %v1043, 25
        %v1054 = vpop.permute.xlu0 %1053
        %v1055 = vrot.slane %v1052, 4
        %v1056 = vrot.slane %v1054, 4
        %v1057 = vsel %vm692, %v1055, %v1052
        %v1058 = vsel %vm619, %v1055, %v1056
        %v1059 = vsel %vm692, %v1058, %v1054
        %v1062 = vadd.f32 %v1044, %v1057
        %v1063 = vadd.f32 %v1045, %v1059
        %1066 = vrot.lane.b32.xlu0 %v1062, 103
        %v1067 = vpop.permute.xlu0 %1066
        %1068 = vrot.lane.b32.xlu0 %v1063, 103
        %v1069 = vpop.permute.xlu0 %1068
        %v1070 = vrot.slane %v1067, 4
        %v1071 = vrot.slane %v1069, 4
        %v1072 = vsel %vm619, %v1070, %v1071
        %v1073 = vsel %vm398, %v1067, %v1072
        %v1074 = vsel %vm398, %v1069, %v1071
        %1077 = vst [vmem:[%s269] sm:$0xff] %v1073
        %1078 = vst [vmem:[%s269 + $0x8] sm:$0xf] %v1074
        %s1079 = sand.u32 %s162, 1
        %s1080 = scalar_lea.sflag [#allocation6], %s1079
        %s1081 = sand.u32 %s162, 1
        %s1082 = smul.addr %s1081, 12
        %s1083 = scalar_lea.vmem [#allocation7], %s1082
        // Predicated region
        $region49: #{tpu_custom_call.1} parent=43 // pred_check
          %p1084 = pneg %p172
        $region50: #{tpu_custom_call.1} parent=43 // pred_check_branch
          %1086 = sbr.rel (%p1084) target = $region52
        $region51: #{tpu_custom_call.1} parent=43 // pred_region
          %1088 = vsyncadd %s1080, 0
          %s1089 = smul.addr %s23, 3
          %s1090 = smul.addr %s1089, 4
          %s1091 = scalar_lea.hbm %s6, %s1090
          %s1093 = sshll.u32 %s1083, 4
          %s1094 = int_to_ptr.vmem [resolvable:$true] %s1093
          %s1095 = sshll.u32 %s1091, 4
          %s1096 = int_to_ptr.hbm [resolvable:$true] %s1095
          %1098 = dma.vmem_to_hbm [thread:$0]  %s1094, 192, %s1096, %s1080
        $region52: #{tpu_custom_call.1} parent=43 // pred_fallthru
          _
      $region44: #{tpu_custom_call.1} parent=5 // pred_fallthru
        _
      %p1099 = scmp.le.s32.totalorder 2, %s18
      // Predicated region
      $region53: #{tpu_custom_call.1} parent=5 // pred_check
        %p1100 = pneg %p1099
      $region54: #{tpu_custom_call.1} parent=5 // pred_check_branch
        %1102 = sbr.rel (%p1100) target = $region56
      $region55: #{tpu_custom_call.1} parent=5 // pred_region
        %s1103 = ssub.s32 %s18, 2
        // Predicated region
        $region57: #{tpu_custom_call.1} parent=55 // pred_check
          %p1104 = pneg %p178
        $region58: #{tpu_custom_call.1} parent=55 // pred_check_branch
          %1106 = sbr.rel (%p1104) target = $region60
        $region59: #{tpu_custom_call.1} parent=55 // pred_region
          %s1107 = sand.u32 %s163, 1
          %s1108 = scalar_lea.sflag [#allocation6], %s1107
          %s1109 = sand.u32 %s163, 1
          %s1110 = smul.addr %s1109, 12
          %s1111 = scalar_lea.vmem [#allocation7], %s1110
          %1113 = dma.done %s1108, 192
        $region60: #{tpu_custom_call.1} parent=55 // pred_fallthru
          _
      $region56: #{tpu_custom_call.1} parent=5 // pred_fallthru
        _
    $region6: #{tpu_custom_call.1} parent=1 // loop_footer
      %s22 = sadd.s32 1, %s18
    $region7: #{tpu_custom_call.1} parent=1 // loop_footer_branch
      %17 = sbr.rel target = $region3
    $region8: #{tpu_custom_call.1} parent=1 // loop_exit
      _
    %1114 = vsyncpa [#allocation5], 1
    %s1115 = scalar_lea.sflag [#allocation5], 1
    %1116 = vsyncpa %s1115, 1
    %1117 = vsyncpa [#allocation6], 1
    %s1118 = scalar_lea.sflag [#allocation6], 1
    %1119 = vsyncpa %s1118, 1

</llo_original>
